<compile_context>
chip_gen: v5e
topology: v5e:2x2
jax: 0.10.0
libtpu: 0.0.40
codegen_flags: <defaults>
</compile_context>

<pallas_src>
import math
import functools

import jax
import jax.numpy as jnp
from jax import lax
from jax.experimental import pallas as pl
from jax.experimental.pallas import tpu as pltpu


# ----------------------------- kernel helpers -------------------------------

def _gelu_exact(x):
    # nn.GELU() default = exact erf-based GELU.
    return 0.5 * x * (1.0 + lax.erf(x * (1.0 / math.sqrt(2.0))))


def _layernorm(x, g, b, eps=1e-5):
    m = jnp.mean(x, axis=-1, keepdims=True)
    v = jnp.mean((x - m) ** 2, axis=-1, keepdims=True)
    return (x - m) * lax.rsqrt(v + eps) * g + b


# ------------------------------- Pallas kernel ------------------------------

def _encoder_block_kernel(num_heads,
                          x_ref, ln1g_ref, ln1b_ref,
                          wqh_ref, bqh_ref, wkh_ref, bkh_ref, wvh_ref, bvh_ref,
                          wph_ref, bp_ref, ln2g_ref, ln2b_ref,
                          w1_ref, b1_ref, w2_ref, b2_ref,
                          o_ref,
                          x1_ref, y2_ref, acc_ref):
    H = num_heads
    N, E = x1_ref.shape
    scaling = math.sqrt(float(E))          # module divides by sqrt(emb_size)
    kf = pl.program_id(1)
    nkf = pl.num_programs(1)

    # ---- phase 1 (first FFN-chunk step only): LN1 + MHA + residual, LN2 ----
    @pl.when(kf == 0)
    def _attention_and_init():
        xb = x_ref[0]                                              # (N, E) f32
        y = _layernorm(xb, ln1g_ref[...], ln1b_ref[...]).astype(jnp.bfloat16)

        # Per-head contribution accumulated immediately into the output
        # projection (no concat), so only ONE head's (N,N)/(N,D) intermediates
        # are live at a time.  H is tiny and static here; for large H switch to
        # lax.fori_loop(0, H, ..., unroll=2-4) with the same body.
        attn = jnp.zeros((N, E), jnp.float32)
        for h in range(H):
            # head-major (E, D) weight slabs -> no lane slicing of activations
            qh = jnp.dot(y, wqh_ref[h], preferred_element_type=jnp.float32) + bqh_ref[h]
            kh = jnp.dot(y, wkh_ref[h], preferred_element_type=jnp.float32) + bkh_ref[h]
            vh = jnp.dot(y, wvh_ref[h], preferred_element_type=jnp.float32) + bvh_ref[h]
            # q @ k^T without materializing a transpose: contract last axes.
            energy = lax.dot_general(
                qh.astype(jnp.bfloat16), kh.astype(jnp.bfloat16),
                dimension_numbers=(((1,), (1,)), ((), ())),
                preferred_element_type=jnp.float32)                # (N, N)
            energy = energy - jnp.max(energy, axis=-1, keepdims=True)
            p = jnp.exp(energy)
            # softmax denom and post-softmax /sqrt(E) fused into one reciprocal
            att = p * pl.reciprocal(
                jnp.sum(p, axis=-1, keepdims=True) * scaling, approx=True)
            head_out = jnp.dot(att.astype(jnp.bfloat16), vh.astype(jnp.bfloat16),
                               preferred_element_type=jnp.float32)  # (N, D)
            # accumulate straight into the output projection
            attn = attn + jnp.dot(head_out.astype(jnp.bfloat16), wph_ref[h],
                                  preferred_element_type=jnp.float32)

        x1 = xb + attn + bp_ref[...]                               # residual 1
        x1_ref[...] = x1
        y2_ref[...] = _layernorm(x1, ln2g_ref[...], ln2b_ref[...]).astype(jnp.bfloat16)
        acc_ref[...] = jnp.zeros((N, E), jnp.float32)

    # ---- phase 2 (every step): one F-chunk of the FeedForward ----
    hdn = jnp.dot(y2_ref[...], w1_ref[...],
                  preferred_element_type=jnp.float32) + b1_ref[...]
    hdn = _gelu_exact(hdn)
    acc_ref[...] += jnp.dot(hdn.astype(jnp.bfloat16), w2_ref[...],
                            preferred_element_type=jnp.float32)

    # ---- finalize (last FFN-chunk step): residual 2 + write ----
    @pl.when(kf == nkf - 1)
    def _finalize():
        o_ref[0] = (x1_ref[...] + acc_ref[...] + b2_ref[...]).astype(o_ref.dtype)


def encoder_block_pallas(x, p, num_heads, ffn_chunk=128):
    B, N, E = x.shape
    H = num_heads
    D = E // H
    F = p["w1"].shape[1]                    # expansion * emb_size
    TF = min(ffn_chunk, F)
    assert F % TF == 0, "FFN hidden dim must divide into chunks"
    KF = F // TF

    c2 = lambda b, k: (0, 0)                # weights: constant block index
    c3 = lambda b, k: (0, 0, 0)

    kernel = functools.partial(_encoder_block_kernel, H)

    return pl.pallas_call(
        kernel,
        out_shape=jax.ShapeDtypeStruct((B, N, E), x.dtype),
        grid_spec=pltpu.PrefetchScalarGridSpec(
            num_scalar_prefetch=0,
            grid=(B, KF),
            in_specs=[
                pl.BlockSpec((1, N, E), lambda b, k: (b, 0, 0)),            # x
                pl.BlockSpec((1, E), c2), pl.BlockSpec((1, E), c2),         # ln1 g/b
                pl.BlockSpec((H, E, D), c3), pl.BlockSpec((H, 1, D), c3),   # wq, bq
                pl.BlockSpec((H, E, D), c3), pl.BlockSpec((H, 1, D), c3),   # wk, bk
                pl.BlockSpec((H, E, D), c3), pl.BlockSpec((H, 1, D), c3),   # wv, bv
                pl.BlockSpec((H, D, E), c3), pl.BlockSpec((1, E), c2),      # wp, bp
                pl.BlockSpec((1, E), c2), pl.BlockSpec((1, E), c2),         # ln2 g/b
                pl.BlockSpec((E, TF), lambda b, k: (0, k)),                 # w1 chunk
                pl.BlockSpec((1, TF), lambda b, k: (0, k)),                 # b1 chunk
                pl.BlockSpec((TF, E), lambda b, k: (k, 0)),                 # w2 chunk
                pl.BlockSpec((1, E), c2),                                   # b2
            ],
            out_specs=pl.BlockSpec((1, N, E), lambda b, k: (b, 0, 0)),
            scratch_shapes=[
                pltpu.VMEM((N, E), jnp.float32),    # x1  (residual-1 output)
                pltpu.VMEM((N, E), jnp.bfloat16),   # y2 = LN2(x1), matmul-ready
                pltpu.VMEM((N, E), jnp.float32),    # FFN accumulator
            ]),
        compiler_params=pltpu.CompilerParams(
            dimension_semantics=("parallel", "arbitrary"),
            # safe on all of v5e/v6e/v7x (<= physical); at big configs raise on
            # v5e/v6e — on v7x keep the F-chunking instead of raising further.
            vmem_limit_bytes=48 * 1024 * 1024),
    )(x,
      p["ln1g"], p["ln1b"],
      p["wqh"], p["bqh"], p["wkh"], p["bkh"], p["wvh"], p["bvh"],
      p["wph"], p["bp"], p["ln2g"], p["ln2b"],
      p["w1"], p["b1"], p["w2"], p["b2"])


# ------------------------- deterministic parameters -------------------------

def init_block_params(key, emb_size, num_heads, expansion):
    E, H = emb_size, num_heads
    D = E // H
    F = expansion * E
    ks = jax.random.split(key, 12)
    s = 0.05

    w_qkv = jax.random.normal(ks[0], (3 * E, E), jnp.float32) * s   # nn.Linear(E, 3E)
    b_qkv = jax.random.normal(ks[1], (3 * E,), jnp.float32) * s
    w_p   = jax.random.normal(ks[2], (E, E), jnp.float32) * s       # nn.Linear(E, E)
    b_p   = jax.random.normal(ks[3], (E,), jnp.float32) * s
    w1    = jax.random.normal(ks[4], (F, E), jnp.float32) * s       # nn.Linear(E, F)
    b1    = jax.random.normal(ks[5], (F,), jnp.float32) * s
    w2    = jax.random.normal(ks[6], (E, F), jnp.float32) * s       # nn.Linear(F, E)
    b2    = jax.random.normal(ks[7], (E,), jnp.float32) * s
    ln1g  = 1.0 + 0.1 * jax.random.normal(ks[8], (E,), jnp.float32)
    ln1b  = 0.1 * jax.random.normal(ks[9], (E,), jnp.float32)
    ln2g  = 1.0 + 0.1 * jax.random.normal(ks[10], (E,), jnp.float32)
    ln2b  = 0.1 * jax.random.normal(ks[11], (E,), jnp.float32)

    # einops 'b n (h d qkv)': qkv-output column (h*D + d)*3 + c holds component c.
    cols = 3 * jnp.arange(E)
    wq, bq = w_qkv[cols + 0, :].T, b_qkv[cols + 0]   # (E_in, E_out head-major)
    wk, bk = w_qkv[cols + 1, :].T, b_qkv[cols + 1]
    wv, bv = w_qkv[cols + 2, :].T, b_qkv[cols + 2]

    to_heads = lambda w: jnp.transpose(w.reshape(E, H, D), (1, 0, 2))   # (H, E, D)
    bf = lambda a: a.astype(jnp.bfloat16)
    r = lambda a: a.reshape(1, -1)

    return {
        # kernel-ready (bf16 matmul weights, head-major slabs, f32 biases/LN)
        "ln1g": r(ln1g), "ln1b": r(ln1b),
        "wqh": bf(to_heads(wq)), "bqh": bq.reshape(H, 1, D),
        "wkh": bf(to_heads(wk)), "bkh": bk.reshape(H, 1, D),
        "wvh": bf(to_heads(wv)), "bvh": bv.reshape(H, 1, D),
        "wph": bf(w_p.T.reshape(H, D, E)), "bp": r(b_p),
        "ln2g": r(ln2g), "ln2b": r(ln2b),
        "w1": bf(w1.T), "b1": r(b1),
        "w2": bf(w2.T), "b2": r(b2),
        # raw PyTorch-layout f32 copies for the pure-JAX reference
        "w_qkv_raw": w_qkv, "b_qkv_raw": b_qkv,
        "wp_raw": w_p, "b_p_raw": b_p,
        "w1_raw": w1, "b1_raw": b1, "w2_raw": w2, "b2_raw": b2,
    }


# ------------------------------ pure-JAX reference ---------------------------

def ref_block(x, p, num_heads):
    B, N, E = x.shape
    H, D = num_heads, E // num_heads
    y = _layernorm(x, p["ln1g"][0], p["ln1b"][0])
    qkv = y @ p["w_qkv_raw"].T + p["b_qkv_raw"]                 # (B, N, 3E)
    qkv = qkv.reshape(B, N, H, D, 3)
    qkv = jnp.transpose(qkv, (4, 0, 2, 1, 3))                   # (3, B, H, N, D)
    q, k, v = qkv[0], qkv[1], qkv[2]
    energy = jnp.einsum("bhqd,bhkd->bhqk", q, k)
    att = jax.nn.softmax(energy, axis=-1) / math.sqrt(E)
    out = jnp.einsum("bhal,bhlv->bhav", att, v)
    out = jnp.transpose(out, (0, 2, 1, 3)).reshape(B, N, E)
    out = out @ p["wp_raw"].T + p["b_p_raw"]
    x1 = x + out
    y2 = _layernorm(x1, p["ln2g"][0], p["ln2b"][0])
    h = jax.nn.gelu(y2 @ p["w1_raw"].T + p["b1_raw"], approximate=False)
    f = h @ p["w2_raw"].T + p["b2_raw"]
    return x1 + f


# ------------------------------------ main -----------------------------------

if __name__ == "__main__":
    args = dict(emb_size=64, num_heads=4, expansion=4, drop_p=0.0, depth=2)
    B, N = 2, 8            # F = 256 -> two 128-wide FFN chunks per block

    key = jax.random.PRNGKey(0)
    kx, kp = jax.random.split(key)
    x = jax.random.normal(kx, (B, N, args["emb_size"]), jnp.float32)

    block_keys = jax.random.split(kp, args["depth"])
    params = [init_block_params(k, args["emb_size"], args["num_heads"], args["expansion"])
              for k in block_keys]

    # Pallas forward (depth sequential blocks)
    out = x
    for p in params:
        out = encoder_block_pallas(out, p, args["num_heads"], ffn_chunk=128)
    out = jax.block_until_ready(out)

    # Pure-JAX f32 reference (kernel uses bf16 matmuls -> loosened tolerance)
    ref = x
    for p in params:
        ref = ref_block(ref, p, args["num_heads"])

    err = float(jnp.max(jnp.abs(out - ref)))
    assert jnp.allclose(out, ref, atol=3e-2, rtol=2e-2), f"max abs err = {err}"
    print("KERNEL_OK")
</pallas_src>

<mosaic_0001>
module attributes {stable_mosaic.version = 11 : i64} {
  func.func @_encoder_block_kernel(%arg0: i32, %arg1: i32, %arg2: memref<1x8x64xf32, #tpu.memory_space<vmem>>, %arg3: memref<1x64xf32, #tpu.memory_space<vmem>>, %arg4: memref<1x64xf32, #tpu.memory_space<vmem>>, %arg5: memref<4x64x16xbf16, #tpu.memory_space<vmem>>, %arg6: memref<4x1x16xf32, #tpu.memory_space<vmem>>, %arg7: memref<4x64x16xbf16, #tpu.memory_space<vmem>>, %arg8: memref<4x1x16xf32, #tpu.memory_space<vmem>>, %arg9: memref<4x64x16xbf16, #tpu.memory_space<vmem>>, %arg10: memref<4x1x16xf32, #tpu.memory_space<vmem>>, %arg11: memref<4x16x64xbf16, #tpu.memory_space<vmem>>, %arg12: memref<1x64xf32, #tpu.memory_space<vmem>>, %arg13: memref<1x64xf32, #tpu.memory_space<vmem>>, %arg14: memref<1x64xf32, #tpu.memory_space<vmem>>, %arg15: memref<64x128xbf16, #tpu.memory_space<vmem>>, %arg16: memref<1x128xf32, #tpu.memory_space<vmem>>, %arg17: memref<128x64xbf16, #tpu.memory_space<vmem>>, %arg18: memref<1x64xf32, #tpu.memory_space<vmem>>, %arg19: memref<1x8x64xf32, #tpu.memory_space<vmem>>, %arg20: memref<8x64xf32, #tpu.memory_space<vmem>>, %arg21: memref<8x64xbf16, #tpu.memory_space<vmem>>, %arg22: memref<8x64xf32, #tpu.memory_space<vmem>>) attributes {dimension_semantics = [#tpu.dimension_semantics<parallel>, #tpu.dimension_semantics<arbitrary>], iteration_bounds = array<i64: 2, 2>, scalar_prefetch = 0 : i64, scratch_operands = 3 : i64, tpu.core_type = #tpu.core_type<tc>, window_params = [{transform_indices = @transform_0, window_bounds = array<i64: 1, 8, 64>}, {pipeline_mode = #tpu.pipeline_mode<synchronous>, transform_indices = @transform_1, window_bounds = array<i64: 1, 64>}, {pipeline_mode = #tpu.pipeline_mode<synchronous>, transform_indices = @transform_2, window_bounds = array<i64: 1, 64>}, {pipeline_mode = #tpu.pipeline_mode<synchronous>, transform_indices = @transform_3, window_bounds = array<i64: 4, 64, 16>}, {pipeline_mode = #tpu.pipeline_mode<synchronous>, transform_indices = @transform_4, window_bounds = array<i64: 4, 1, 16>}, {pipeline_mode = #tpu.pipeline_mode<synchronous>, transform_indices = @transform_5, window_bounds = array<i64: 4, 64, 16>}, {pipeline_mode = #tpu.pipeline_mode<synchronous>, transform_indices = @transform_6, window_bounds = array<i64: 4, 1, 16>}, {pipeline_mode = #tpu.pipeline_mode<synchronous>, transform_indices = @transform_7, window_bounds = array<i64: 4, 64, 16>}, {pipeline_mode = #tpu.pipeline_mode<synchronous>, transform_indices = @transform_8, window_bounds = array<i64: 4, 1, 16>}, {pipeline_mode = #tpu.pipeline_mode<synchronous>, transform_indices = @transform_9, window_bounds = array<i64: 4, 16, 64>}, {pipeline_mode = #tpu.pipeline_mode<synchronous>, transform_indices = @transform_10, window_bounds = array<i64: 1, 64>}, {pipeline_mode = #tpu.pipeline_mode<synchronous>, transform_indices = @transform_11, window_bounds = array<i64: 1, 64>}, {pipeline_mode = #tpu.pipeline_mode<synchronous>, transform_indices = @transform_12, window_bounds = array<i64: 1, 64>}, {transform_indices = @transform_13, window_bounds = array<i64: 64, 128>}, {transform_indices = @transform_14, window_bounds = array<i64: 1, 128>}, {transform_indices = @transform_15, window_bounds = array<i64: 128, 64>}, {pipeline_mode = #tpu.pipeline_mode<synchronous>, transform_indices = @transform_16, window_bounds = array<i64: 1, 64>}, {transform_indices = @transform_17, window_bounds = array<i64: 1, 8, 64>}]} {
    %c0_i32 = arith.constant 0 : i32
    %0 = arith.cmpi eq, %arg1, %c0_i32 : i32
    %1 = arith.extui %0 : i1 to i32
    %c0_i32_0 = arith.constant 0 : i32
    %2 = arith.cmpi ne, %1, %c0_i32_0 : i32
    scf.if %2 {
      %c0_17 = arith.constant 0 : index
      %c0_18 = arith.constant 0 : index
      %c0_19 = arith.constant 0 : index
      %26 = vector.load %arg2[%c0_17, %c0_18, %c0_19] : memref<1x8x64xf32, #tpu.memory_space<vmem>>, vector<1x8x64xf32>
      %27 = vector.shape_cast %26 : vector<1x8x64xf32> to vector<8x64xf32>
      %c0_20 = arith.constant 0 : index
      %c0_21 = arith.constant 0 : index
      %28 = vector.load %arg3[%c0_20, %c0_21] : memref<1x64xf32, #tpu.memory_space<vmem>>, vector<1x64xf32>
      %c0_22 = arith.constant 0 : index
      %c0_23 = arith.constant 0 : index
      %29 = vector.load %arg4[%c0_22, %c0_23] : memref<1x64xf32, #tpu.memory_space<vmem>>, vector<1x64xf32>
      %cst_24 = arith.constant dense<0.000000e+00> : vector<8xf32>
      %30 = vector.multi_reduction <add>, %27, %cst_24 [1] : vector<8x64xf32> to vector<8xf32>
      %31 = vector.shape_cast %30 : vector<8xf32> to vector<8x1xf32>
      %cst_25 = arith.constant 6.400000e+01 : f32
      %32 = vector.broadcast %cst_25 : f32 to vector<8x1xf32>
      %33 = arith.divf %31, %32 : vector<8x1xf32>
      %34 = vector.broadcast %33 : vector<8x1xf32> to vector<8x64xf32>
      %35 = arith.subf %27, %34 : vector<8x64xf32>
      %36 = arith.mulf %35, %35 : vector<8x64xf32>
      %cst_26 = arith.constant dense<0.000000e+00> : vector<8xf32>
      %37 = vector.multi_reduction <add>, %36, %cst_26 [1] : vector<8x64xf32> to vector<8xf32>
      %38 = vector.shape_cast %37 : vector<8xf32> to vector<8x1xf32>
      %cst_27 = arith.constant 6.400000e+01 : f32
      %39 = vector.broadcast %cst_27 : f32 to vector<8x1xf32>
      %40 = arith.divf %38, %39 : vector<8x1xf32>
      %41 = vector.broadcast %33 : vector<8x1xf32> to vector<8x64xf32>
      %42 = arith.subf %27, %41 : vector<8x64xf32>
      %cst_28 = arith.constant 9.99999974E-6 : f32
      %43 = vector.broadcast %cst_28 : f32 to vector<8x1xf32>
      %44 = arith.addf %40, %43 : vector<8x1xf32>
      %45 = math.rsqrt %44 : vector<8x1xf32>
      %46 = vector.broadcast %45 : vector<8x1xf32> to vector<8x64xf32>
      %47 = arith.mulf %42, %46 : vector<8x64xf32>
      %48 = vector.broadcast %28 : vector<1x64xf32> to vector<8x64xf32>
      %49 = arith.mulf %47, %48 : vector<8x64xf32>
      %50 = vector.broadcast %29 : vector<1x64xf32> to vector<8x64xf32>
      %51 = arith.addf %49, %50 : vector<8x64xf32>
      %52 = arith.truncf %51 : vector<8x64xf32> to vector<8x64xbf16>
      %cst_29 = arith.constant 0.000000e+00 : f32
      %53 = vector.broadcast %cst_29 : f32 to vector<8x64xf32>
      %c0_30 = arith.constant 0 : index
      %c0_31 = arith.constant 0 : index
      %c0_32 = arith.constant 0 : index
      %54 = vector.load %arg5[%c0_30, %c0_31, %c0_32] : memref<4x64x16xbf16, #tpu.memory_space<vmem>>, vector<1x64x16xbf16>
      %55 = vector.shape_cast %54 : vector<1x64x16xbf16> to vector<64x16xbf16>
      %cst_33 = arith.constant dense<0.000000e+00> : vector<8x16xf32>
      %56 = tpu.matmul %52, %55, %cst_33 {dimension_numbers = #tpu.dot_dimension_numbers<[1], [0], [0], [1], [0, 0, 1, 1], [], []>} : vector<8x64xbf16>, vector<64x16xbf16>, vector<8x16xf32> -> vector<8x16xf32>
      %c0_34 = arith.constant 0 : index
      %c0_35 = arith.constant 0 : index
      %c0_36 = arith.constant 0 : index
      %57 = vector.load %arg6[%c0_34, %c0_35, %c0_36] : memref<4x1x16xf32, #tpu.memory_space<vmem>>, vector<1x1x16xf32>
      %58 = vector.shape_cast %57 : vector<1x1x16xf32> to vector<1x16xf32>
      %59 = vector.broadcast %58 : vector<1x16xf32> to vector<8x16xf32>
      %60 = arith.addf %56, %59 : vector<8x16xf32>
      %c0_37 = arith.constant 0 : index
      %c0_38 = arith.constant 0 : index
      %c0_39 = arith.constant 0 : index
      %61 = vector.load %arg7[%c0_37, %c0_38, %c0_39] : memref<4x64x16xbf16, #tpu.memory_space<vmem>>, vector<1x64x16xbf16>
      %62 = vector.shape_cast %61 : vector<1x64x16xbf16> to vector<64x16xbf16>
      %cst_40 = arith.constant dense<0.000000e+00> : vector<8x16xf32>
      %63 = tpu.matmul %52, %62, %cst_40 {dimension_numbers = #tpu.dot_dimension_numbers<[1], [0], [0], [1], [0, 0, 1, 1], [], []>} : vector<8x64xbf16>, vector<64x16xbf16>, vector<8x16xf32> -> vector<8x16xf32>
      %c0_41 = arith.constant 0 : index
      %c0_42 = arith.constant 0 : index
      %c0_43 = arith.constant 0 : index
      %64 = vector.load %arg8[%c0_41, %c0_42, %c0_43] : memref<4x1x16xf32, #tpu.memory_space<vmem>>, vector<1x1x16xf32>
      %65 = vector.shape_cast %64 : vector<1x1x16xf32> to vector<1x16xf32>
      %66 = vector.broadcast %65 : vector<1x16xf32> to vector<8x16xf32>
      %67 = arith.addf %63, %66 : vector<8x16xf32>
      %c0_44 = arith.constant 0 : index
      %c0_45 = arith.constant 0 : index
      %c0_46 = arith.constant 0 : index
      %68 = vector.load %arg9[%c0_44, %c0_45, %c0_46] : memref<4x64x16xbf16, #tpu.memory_space<vmem>>, vector<1x64x16xbf16>
      %69 = vector.shape_cast %68 : vector<1x64x16xbf16> to vector<64x16xbf16>
      %cst_47 = arith.constant dense<0.000000e+00> : vector<8x16xf32>
      %70 = tpu.matmul %52, %69, %cst_47 {dimension_numbers = #tpu.dot_dimension_numbers<[1], [0], [0], [1], [0, 0, 1, 1], [], []>} : vector<8x64xbf16>, vector<64x16xbf16>, vector<8x16xf32> -> vector<8x16xf32>
      %c0_48 = arith.constant 0 : index
      %c0_49 = arith.constant 0 : index
      %c0_50 = arith.constant 0 : index
      %71 = vector.load %arg10[%c0_48, %c0_49, %c0_50] : memref<4x1x16xf32, #tpu.memory_space<vmem>>, vector<1x1x16xf32>
      %72 = vector.shape_cast %71 : vector<1x1x16xf32> to vector<1x16xf32>
      %73 = vector.broadcast %72 : vector<1x16xf32> to vector<8x16xf32>
      %74 = arith.addf %70, %73 : vector<8x16xf32>
      %75 = arith.truncf %60 : vector<8x16xf32> to vector<8x16xbf16>
      %76 = arith.truncf %67 : vector<8x16xf32> to vector<8x16xbf16>
      %cst_51 = arith.constant dense<0.000000e+00> : vector<8x8xf32>
      %77 = tpu.matmul %75, %76, %cst_51 {dimension_numbers = #tpu.dot_dimension_numbers<[1], [1], [0], [0], [0, 0, 1, 0], [], []>} : vector<8x16xbf16>, vector<8x16xbf16>, vector<8x8xf32> -> vector<8x8xf32>
      %cst_52 = arith.constant dense<0xFF800000> : vector<8xf32>
      %78 = vector.multi_reduction <maximumf>, %77, %cst_52 [1] : vector<8x8xf32> to vector<8xf32>
      %79 = vector.shape_cast %78 : vector<8xf32> to vector<8x1xf32>
      %80 = vector.broadcast %79 : vector<8x1xf32> to vector<8x8xf32>
      %81 = arith.subf %77, %80 : vector<8x8xf32>
      %82 = math.exp %81 : vector<8x8xf32>
      %cst_53 = arith.constant dense<0.000000e+00> : vector<8xf32>
      %83 = vector.multi_reduction <add>, %82, %cst_53 [1] : vector<8x8xf32> to vector<8xf32>
      %84 = vector.shape_cast %83 : vector<8xf32> to vector<8x1xf32>
      %cst_54 = arith.constant 8.000000e+00 : f32
      %85 = vector.broadcast %cst_54 : f32 to vector<8x1xf32>
      %86 = arith.mulf %84, %85 : vector<8x1xf32>
      %87 = tpu.reciprocal %86 {approx = true} : vector<8x1xf32> -> vector<8x1xf32>
      %88 = vector.broadcast %87 : vector<8x1xf32> to vector<8x8xf32>
      %89 = arith.mulf %82, %88 : vector<8x8xf32>
      %90 = arith.truncf %89 : vector<8x8xf32> to vector<8x8xbf16>
      %91 = arith.truncf %74 : vector<8x16xf32> to vector<8x16xbf16>
      %cst_55 = arith.constant dense<0.000000e+00> : vector<8x16xf32>
      %92 = tpu.matmul %90, %91, %cst_55 {dimension_numbers = #tpu.dot_dimension_numbers<[1], [0], [0], [1], [0, 0, 1, 1], [], []>} : vector<8x8xbf16>, vector<8x16xbf16>, vector<8x16xf32> -> vector<8x16xf32>
      %93 = arith.truncf %92 : vector<8x16xf32> to vector<8x16xbf16>
      %c0_56 = arith.constant 0 : index
      %c0_57 = arith.constant 0 : index
      %c0_58 = arith.constant 0 : index
      %94 = vector.load %arg11[%c0_56, %c0_57, %c0_58] : memref<4x16x64xbf16, #tpu.memory_space<vmem>>, vector<1x16x64xbf16>
      %95 = vector.shape_cast %94 : vector<1x16x64xbf16> to vector<16x64xbf16>
      %cst_59 = arith.constant dense<0.000000e+00> : vector<8x64xf32>
      %96 = tpu.matmul %93, %95, %cst_59 {dimension_numbers = #tpu.dot_dimension_numbers<[1], [0], [0], [1], [0, 0, 1, 1], [], []>} : vector<8x16xbf16>, vector<16x64xbf16>, vector<8x64xf32> -> vector<8x64xf32>
      %97 = arith.addf %53, %96 : vector<8x64xf32>
      %c1 = arith.constant 1 : index
      %c0_60 = arith.constant 0 : index
      %c0_61 = arith.constant 0 : index
      %98 = vector.load %arg5[%c1, %c0_60, %c0_61] : memref<4x64x16xbf16, #tpu.memory_space<vmem>>, vector<1x64x16xbf16>
      %99 = vector.shape_cast %98 : vector<1x64x16xbf16> to vector<64x16xbf16>
      %cst_62 = arith.constant dense<0.000000e+00> : vector<8x16xf32>
      %100 = tpu.matmul %52, %99, %cst_62 {dimension_numbers = #tpu.dot_dimension_numbers<[1], [0], [0], [1], [0, 0, 1, 1], [], []>} : vector<8x64xbf16>, vector<64x16xbf16>, vector<8x16xf32> -> vector<8x16xf32>
      %c1_63 = arith.constant 1 : index
      %c0_64 = arith.constant 0 : index
      %c0_65 = arith.constant 0 : index
      %101 = vector.load %arg6[%c1_63, %c0_64, %c0_65] : memref<4x1x16xf32, #tpu.memory_space<vmem>>, vector<1x1x16xf32>
      %102 = vector.shape_cast %101 : vector<1x1x16xf32> to vector<1x16xf32>
      %103 = vector.broadcast %102 : vector<1x16xf32> to vector<8x16xf32>
      %104 = arith.addf %100, %103 : vector<8x16xf32>
      %c1_66 = arith.constant 1 : index
      %c0_67 = arith.constant 0 : index
      %c0_68 = arith.constant 0 : index
      %105 = vector.load %arg7[%c1_66, %c0_67, %c0_68] : memref<4x64x16xbf16, #tpu.memory_space<vmem>>, vector<1x64x16xbf16>
      %106 = vector.shape_cast %105 : vector<1x64x16xbf16> to vector<64x16xbf16>
      %cst_69 = arith.constant dense<0.000000e+00> : vector<8x16xf32>
      %107 = tpu.matmul %52, %106, %cst_69 {dimension_numbers = #tpu.dot_dimension_numbers<[1], [0], [0], [1], [0, 0, 1, 1], [], []>} : vector<8x64xbf16>, vector<64x16xbf16>, vector<8x16xf32> -> vector<8x16xf32>
      %c1_70 = arith.constant 1 : index
      %c0_71 = arith.constant 0 : index
      %c0_72 = arith.constant 0 : index
      %108 = vector.load %arg8[%c1_70, %c0_71, %c0_72] : memref<4x1x16xf32, #tpu.memory_space<vmem>>, vector<1x1x16xf32>
      %109 = vector.shape_cast %108 : vector<1x1x16xf32> to vector<1x16xf32>
      %110 = vector.broadcast %109 : vector<1x16xf32> to vector<8x16xf32>
      %111 = arith.addf %107, %110 : vector<8x16xf32>
      %c1_73 = arith.constant 1 : index
      %c0_74 = arith.constant 0 : index
      %c0_75 = arith.constant 0 : index
      %112 = vector.load %arg9[%c1_73, %c0_74, %c0_75] : memref<4x64x16xbf16, #tpu.memory_space<vmem>>, vector<1x64x16xbf16>
      %113 = vector.shape_cast %112 : vector<1x64x16xbf16> to vector<64x16xbf16>
      %cst_76 = arith.constant dense<0.000000e+00> : vector<8x16xf32>
      %114 = tpu.matmul %52, %113, %cst_76 {dimension_numbers = #tpu.dot_dimension_numbers<[1], [0], [0], [1], [0, 0, 1, 1], [], []>} : vector<8x64xbf16>, vector<64x16xbf16>, vector<8x16xf32> -> vector<8x16xf32>
      %c1_77 = arith.constant 1 : index
      %c0_78 = arith.constant 0 : index
      %c0_79 = arith.constant 0 : index
      %115 = vector.load %arg10[%c1_77, %c0_78, %c0_79] : memref<4x1x16xf32, #tpu.memory_space<vmem>>, vector<1x1x16xf32>
      %116 = vector.shape_cast %115 : vector<1x1x16xf32> to vector<1x16xf32>
      %117 = vector.broadcast %116 : vector<1x16xf32> to vector<8x16xf32>
      %118 = arith.addf %114, %117 : vector<8x16xf32>
      %119 = arith.truncf %104 : vector<8x16xf32> to vector<8x16xbf16>
      %120 = arith.truncf %111 : vector<8x16xf32> to vector<8x16xbf16>
      %cst_80 = arith.constant dense<0.000000e+00> : vector<8x8xf32>
      %121 = tpu.matmul %119, %120, %cst_80 {dimension_numbers = #tpu.dot_dimension_numbers<[1], [1], [0], [0], [0, 0, 1, 0], [], []>} : vector<8x16xbf16>, vector<8x16xbf16>, vector<8x8xf32> -> vector<8x8xf32>
      %cst_81 = arith.constant dense<0xFF800000> : vector<8xf32>
      %122 = vector.multi_reduction <maximumf>, %121, %cst_81 [1] : vector<8x8xf32> to vector<8xf32>
      %123 = vector.shape_cast %122 : vector<8xf32> to vector<8x1xf32>
      %124 = vector.broadcast %123 : vector<8x1xf32> to vector<8x8xf32>
      %125 = arith.subf %121, %124 : vector<8x8xf32>
      %126 = math.exp %125 : vector<8x8xf32>
      %cst_82 = arith.constant dense<0.000000e+00> : vector<8xf32>
      %127 = vector.multi_reduction <add>, %126, %cst_82 [1] : vector<8x8xf32> to vector<8xf32>
      %128 = vector.shape_cast %127 : vector<8xf32> to vector<8x1xf32>
      %cst_83 = arith.constant 8.000000e+00 : f32
      %129 = vector.broadcast %cst_83 : f32 to vector<8x1xf32>
      %130 = arith.mulf %128, %129 : vector<8x1xf32>
      %131 = tpu.reciprocal %130 {approx = true} : vector<8x1xf32> -> vector<8x1xf32>
      %132 = vector.broadcast %131 : vector<8x1xf32> to vector<8x8xf32>
      %133 = arith.mulf %126, %132 : vector<8x8xf32>
      %134 = arith.truncf %133 : vector<8x8xf32> to vector<8x8xbf16>
      %135 = arith.truncf %118 : vector<8x16xf32> to vector<8x16xbf16>
      %cst_84 = arith.constant dense<0.000000e+00> : vector<8x16xf32>
      %136 = tpu.matmul %134, %135, %cst_84 {dimension_numbers = #tpu.dot_dimension_numbers<[1], [0], [0], [1], [0, 0, 1, 1], [], []>} : vector<8x8xbf16>, vector<8x16xbf16>, vector<8x16xf32> -> vector<8x16xf32>
      %137 = arith.truncf %136 : vector<8x16xf32> to vector<8x16xbf16>
      %c1_85 = arith.constant 1 : index
      %c0_86 = arith.constant 0 : index
      %c0_87 = arith.constant 0 : index
      %138 = vector.load %arg11[%c1_85, %c0_86, %c0_87] : memref<4x16x64xbf16, #tpu.memory_space<vmem>>, vector<1x16x64xbf16>
      %139 = vector.shape_cast %138 : vector<1x16x64xbf16> to vector<16x64xbf16>
      %cst_88 = arith.constant dense<0.000000e+00> : vector<8x64xf32>
      %140 = tpu.matmul %137, %139, %cst_88 {dimension_numbers = #tpu.dot_dimension_numbers<[1], [0], [0], [1], [0, 0, 1, 1], [], []>} : vector<8x16xbf16>, vector<16x64xbf16>, vector<8x64xf32> -> vector<8x64xf32>
      %141 = arith.addf %97, %140 : vector<8x64xf32>
      %c2 = arith.constant 2 : index
      %c0_89 = arith.constant 0 : index
      %c0_90 = arith.constant 0 : index
      %142 = vector.load %arg5[%c2, %c0_89, %c0_90] : memref<4x64x16xbf16, #tpu.memory_space<vmem>>, vector<1x64x16xbf16>
      %143 = vector.shape_cast %142 : vector<1x64x16xbf16> to vector<64x16xbf16>
      %cst_91 = arith.constant dense<0.000000e+00> : vector<8x16xf32>
      %144 = tpu.matmul %52, %143, %cst_91 {dimension_numbers = #tpu.dot_dimension_numbers<[1], [0], [0], [1], [0, 0, 1, 1], [], []>} : vector<8x64xbf16>, vector<64x16xbf16>, vector<8x16xf32> -> vector<8x16xf32>
      %c2_92 = arith.constant 2 : index
      %c0_93 = arith.constant 0 : index
      %c0_94 = arith.constant 0 : index
      %145 = vector.load %arg6[%c2_92, %c0_93, %c0_94] : memref<4x1x16xf32, #tpu.memory_space<vmem>>, vector<1x1x16xf32>
      %146 = vector.shape_cast %145 : vector<1x1x16xf32> to vector<1x16xf32>
      %147 = vector.broadcast %146 : vector<1x16xf32> to vector<8x16xf32>
      %148 = arith.addf %144, %147 : vector<8x16xf32>
      %c2_95 = arith.constant 2 : index
      %c0_96 = arith.constant 0 : index
      %c0_97 = arith.constant 0 : index
      %149 = vector.load %arg7[%c2_95, %c0_96, %c0_97] : memref<4x64x16xbf16, #tpu.memory_space<vmem>>, vector<1x64x16xbf16>
      %150 = vector.shape_cast %149 : vector<1x64x16xbf16> to vector<64x16xbf16>
      %cst_98 = arith.constant dense<0.000000e+00> : vector<8x16xf32>
      %151 = tpu.matmul %52, %150, %cst_98 {dimension_numbers = #tpu.dot_dimension_numbers<[1], [0], [0], [1], [0, 0, 1, 1], [], []>} : vector<8x64xbf16>, vector<64x16xbf16>, vector<8x16xf32> -> vector<8x16xf32>
      %c2_99 = arith.constant 2 : index
      %c0_100 = arith.constant 0 : index
      %c0_101 = arith.constant 0 : index
      %152 = vector.load %arg8[%c2_99, %c0_100, %c0_101] : memref<4x1x16xf32, #tpu.memory_space<vmem>>, vector<1x1x16xf32>
      %153 = vector.shape_cast %152 : vector<1x1x16xf32> to vector<1x16xf32>
      %154 = vector.broadcast %153 : vector<1x16xf32> to vector<8x16xf32>
      %155 = arith.addf %151, %154 : vector<8x16xf32>
      %c2_102 = arith.constant 2 : index
      %c0_103 = arith.constant 0 : index
      %c0_104 = arith.constant 0 : index
      %156 = vector.load %arg9[%c2_102, %c0_103, %c0_104] : memref<4x64x16xbf16, #tpu.memory_space<vmem>>, vector<1x64x16xbf16>
      %157 = vector.shape_cast %156 : vector<1x64x16xbf16> to vector<64x16xbf16>
      %cst_105 = arith.constant dense<0.000000e+00> : vector<8x16xf32>
      %158 = tpu.matmul %52, %157, %cst_105 {dimension_numbers = #tpu.dot_dimension_numbers<[1], [0], [0], [1], [0, 0, 1, 1], [], []>} : vector<8x64xbf16>, vector<64x16xbf16>, vector<8x16xf32> -> vector<8x16xf32>
      %c2_106 = arith.constant 2 : index
      %c0_107 = arith.constant 0 : index
      %c0_108 = arith.constant 0 : index
      %159 = vector.load %arg10[%c2_106, %c0_107, %c0_108] : memref<4x1x16xf32, #tpu.memory_space<vmem>>, vector<1x1x16xf32>
      %160 = vector.shape_cast %159 : vector<1x1x16xf32> to vector<1x16xf32>
      %161 = vector.broadcast %160 : vector<1x16xf32> to vector<8x16xf32>
      %162 = arith.addf %158, %161 : vector<8x16xf32>
      %163 = arith.truncf %148 : vector<8x16xf32> to vector<8x16xbf16>
      %164 = arith.truncf %155 : vector<8x16xf32> to vector<8x16xbf16>
      %cst_109 = arith.constant dense<0.000000e+00> : vector<8x8xf32>
      %165 = tpu.matmul %163, %164, %cst_109 {dimension_numbers = #tpu.dot_dimension_numbers<[1], [1], [0], [0], [0, 0, 1, 0], [], []>} : vector<8x16xbf16>, vector<8x16xbf16>, vector<8x8xf32> -> vector<8x8xf32>
      %cst_110 = arith.constant dense<0xFF800000> : vector<8xf32>
      %166 = vector.multi_reduction <maximumf>, %165, %cst_110 [1] : vector<8x8xf32> to vector<8xf32>
      %167 = vector.shape_cast %166 : vector<8xf32> to vector<8x1xf32>
      %168 = vector.broadcast %167 : vector<8x1xf32> to vector<8x8xf32>
      %169 = arith.subf %165, %168 : vector<8x8xf32>
      %170 = math.exp %169 : vector<8x8xf32>
      %cst_111 = arith.constant dense<0.000000e+00> : vector<8xf32>
      %171 = vector.multi_reduction <add>, %170, %cst_111 [1] : vector<8x8xf32> to vector<8xf32>
      %172 = vector.shape_cast %171 : vector<8xf32> to vector<8x1xf32>
      %cst_112 = arith.constant 8.000000e+00 : f32
      %173 = vector.broadcast %cst_112 : f32 to vector<8x1xf32>
      %174 = arith.mulf %172, %173 : vector<8x1xf32>
      %175 = tpu.reciprocal %174 {approx = true} : vector<8x1xf32> -> vector<8x1xf32>
      %176 = vector.broadcast %175 : vector<8x1xf32> to vector<8x8xf32>
      %177 = arith.mulf %170, %176 : vector<8x8xf32>
      %178 = arith.truncf %177 : vector<8x8xf32> to vector<8x8xbf16>
      %179 = arith.truncf %162 : vector<8x16xf32> to vector<8x16xbf16>
      %cst_113 = arith.constant dense<0.000000e+00> : vector<8x16xf32>
      %180 = tpu.matmul %178, %179, %cst_113 {dimension_numbers = #tpu.dot_dimension_numbers<[1], [0], [0], [1], [0, 0, 1, 1], [], []>} : vector<8x8xbf16>, vector<8x16xbf16>, vector<8x16xf32> -> vector<8x16xf32>
      %181 = arith.truncf %180 : vector<8x16xf32> to vector<8x16xbf16>
      %c2_114 = arith.constant 2 : index
      %c0_115 = arith.constant 0 : index
      %c0_116 = arith.constant 0 : index
      %182 = vector.load %arg11[%c2_114, %c0_115, %c0_116] : memref<4x16x64xbf16, #tpu.memory_space<vmem>>, vector<1x16x64xbf16>
      %183 = vector.shape_cast %182 : vector<1x16x64xbf16> to vector<16x64xbf16>
      %cst_117 = arith.constant dense<0.000000e+00> : vector<8x64xf32>
      %184 = tpu.matmul %181, %183, %cst_117 {dimension_numbers = #tpu.dot_dimension_numbers<[1], [0], [0], [1], [0, 0, 1, 1], [], []>} : vector<8x16xbf16>, vector<16x64xbf16>, vector<8x64xf32> -> vector<8x64xf32>
      %185 = arith.addf %141, %184 : vector<8x64xf32>
      %c3 = arith.constant 3 : index
      %c0_118 = arith.constant 0 : index
      %c0_119 = arith.constant 0 : index
      %186 = vector.load %arg5[%c3, %c0_118, %c0_119] : memref<4x64x16xbf16, #tpu.memory_space<vmem>>, vector<1x64x16xbf16>
      %187 = vector.shape_cast %186 : vector<1x64x16xbf16> to vector<64x16xbf16>
      %cst_120 = arith.constant dense<0.000000e+00> : vector<8x16xf32>
      %188 = tpu.matmul %52, %187, %cst_120 {dimension_numbers = #tpu.dot_dimension_numbers<[1], [0], [0], [1], [0, 0, 1, 1], [], []>} : vector<8x64xbf16>, vector<64x16xbf16>, vector<8x16xf32> -> vector<8x16xf32>
      %c3_121 = arith.constant 3 : index
      %c0_122 = arith.constant 0 : index
      %c0_123 = arith.constant 0 : index
      %189 = vector.load %arg6[%c3_121, %c0_122, %c0_123] : memref<4x1x16xf32, #tpu.memory_space<vmem>>, vector<1x1x16xf32>
      %190 = vector.shape_cast %189 : vector<1x1x16xf32> to vector<1x16xf32>
      %191 = vector.broadcast %190 : vector<1x16xf32> to vector<8x16xf32>
      %192 = arith.addf %188, %191 : vector<8x16xf32>
      %c3_124 = arith.constant 3 : index
      %c0_125 = arith.constant 0 : index
      %c0_126 = arith.constant 0 : index
      %193 = vector.load %arg7[%c3_124, %c0_125, %c0_126] : memref<4x64x16xbf16, #tpu.memory_space<vmem>>, vector<1x64x16xbf16>
      %194 = vector.shape_cast %193 : vector<1x64x16xbf16> to vector<64x16xbf16>
      %cst_127 = arith.constant dense<0.000000e+00> : vector<8x16xf32>
      %195 = tpu.matmul %52, %194, %cst_127 {dimension_numbers = #tpu.dot_dimension_numbers<[1], [0], [0], [1], [0, 0, 1, 1], [], []>} : vector<8x64xbf16>, vector<64x16xbf16>, vector<8x16xf32> -> vector<8x16xf32>
      %c3_128 = arith.constant 3 : index
      %c0_129 = arith.constant 0 : index
      %c0_130 = arith.constant 0 : index
      %196 = vector.load %arg8[%c3_128, %c0_129, %c0_130] : memref<4x1x16xf32, #tpu.memory_space<vmem>>, vector<1x1x16xf32>
      %197 = vector.shape_cast %196 : vector<1x1x16xf32> to vector<1x16xf32>
      %198 = vector.broadcast %197 : vector<1x16xf32> to vector<8x16xf32>
      %199 = arith.addf %195, %198 : vector<8x16xf32>
      %c3_131 = arith.constant 3 : index
      %c0_132 = arith.constant 0 : index
      %c0_133 = arith.constant 0 : index
      %200 = vector.load %arg9[%c3_131, %c0_132, %c0_133] : memref<4x64x16xbf16, #tpu.memory_space<vmem>>, vector<1x64x16xbf16>
      %201 = vector.shape_cast %200 : vector<1x64x16xbf16> to vector<64x16xbf16>
      %cst_134 = arith.constant dense<0.000000e+00> : vector<8x16xf32>
      %202 = tpu.matmul %52, %201, %cst_134 {dimension_numbers = #tpu.dot_dimension_numbers<[1], [0], [0], [1], [0, 0, 1, 1], [], []>} : vector<8x64xbf16>, vector<64x16xbf16>, vector<8x16xf32> -> vector<8x16xf32>
      %c3_135 = arith.constant 3 : index
      %c0_136 = arith.constant 0 : index
      %c0_137 = arith.constant 0 : index
      %203 = vector.load %arg10[%c3_135, %c0_136, %c0_137] : memref<4x1x16xf32, #tpu.memory_space<vmem>>, vector<1x1x16xf32>
      %204 = vector.shape_cast %203 : vector<1x1x16xf32> to vector<1x16xf32>
      %205 = vector.broadcast %204 : vector<1x16xf32> to vector<8x16xf32>
      %206 = arith.addf %202, %205 : vector<8x16xf32>
      %207 = arith.truncf %192 : vector<8x16xf32> to vector<8x16xbf16>
      %208 = arith.truncf %199 : vector<8x16xf32> to vector<8x16xbf16>
      %cst_138 = arith.constant dense<0.000000e+00> : vector<8x8xf32>
      %209 = tpu.matmul %207, %208, %cst_138 {dimension_numbers = #tpu.dot_dimension_numbers<[1], [1], [0], [0], [0, 0, 1, 0], [], []>} : vector<8x16xbf16>, vector<8x16xbf16>, vector<8x8xf32> -> vector<8x8xf32>
      %cst_139 = arith.constant dense<0xFF800000> : vector<8xf32>
      %210 = vector.multi_reduction <maximumf>, %209, %cst_139 [1] : vector<8x8xf32> to vector<8xf32>
      %211 = vector.shape_cast %210 : vector<8xf32> to vector<8x1xf32>
      %212 = vector.broadcast %211 : vector<8x1xf32> to vector<8x8xf32>
      %213 = arith.subf %209, %212 : vector<8x8xf32>
      %214 = math.exp %213 : vector<8x8xf32>
      %cst_140 = arith.constant dense<0.000000e+00> : vector<8xf32>
      %215 = vector.multi_reduction <add>, %214, %cst_140 [1] : vector<8x8xf32> to vector<8xf32>
      %216 = vector.shape_cast %215 : vector<8xf32> to vector<8x1xf32>
      %cst_141 = arith.constant 8.000000e+00 : f32
      %217 = vector.broadcast %cst_141 : f32 to vector<8x1xf32>
      %218 = arith.mulf %216, %217 : vector<8x1xf32>
      %219 = tpu.reciprocal %218 {approx = true} : vector<8x1xf32> -> vector<8x1xf32>
      %220 = vector.broadcast %219 : vector<8x1xf32> to vector<8x8xf32>
      %221 = arith.mulf %214, %220 : vector<8x8xf32>
      %222 = arith.truncf %221 : vector<8x8xf32> to vector<8x8xbf16>
      %223 = arith.truncf %206 : vector<8x16xf32> to vector<8x16xbf16>
      %cst_142 = arith.constant dense<0.000000e+00> : vector<8x16xf32>
      %224 = tpu.matmul %222, %223, %cst_142 {dimension_numbers = #tpu.dot_dimension_numbers<[1], [0], [0], [1], [0, 0, 1, 1], [], []>} : vector<8x8xbf16>, vector<8x16xbf16>, vector<8x16xf32> -> vector<8x16xf32>
      %225 = arith.truncf %224 : vector<8x16xf32> to vector<8x16xbf16>
      %c3_143 = arith.constant 3 : index
      %c0_144 = arith.constant 0 : index
      %c0_145 = arith.constant 0 : index
      %226 = vector.load %arg11[%c3_143, %c0_144, %c0_145] : memref<4x16x64xbf16, #tpu.memory_space<vmem>>, vector<1x16x64xbf16>
      %227 = vector.shape_cast %226 : vector<1x16x64xbf16> to vector<16x64xbf16>
      %cst_146 = arith.constant dense<0.000000e+00> : vector<8x64xf32>
      %228 = tpu.matmul %225, %227, %cst_146 {dimension_numbers = #tpu.dot_dimension_numbers<[1], [0], [0], [1], [0, 0, 1, 1], [], []>} : vector<8x16xbf16>, vector<16x64xbf16>, vector<8x64xf32> -> vector<8x64xf32>
      %229 = arith.addf %185, %228 : vector<8x64xf32>
      %230 = arith.addf %27, %229 : vector<8x64xf32>
      %c0_147 = arith.constant 0 : index
      %c0_148 = arith.constant 0 : index
      %231 = vector.load %arg12[%c0_147, %c0_148] : memref<1x64xf32, #tpu.memory_space<vmem>>, vector<1x64xf32>
      %232 = vector.broadcast %231 : vector<1x64xf32> to vector<8x64xf32>
      %233 = arith.addf %230, %232 : vector<8x64xf32>
      %c0_149 = arith.constant 0 : index
      %c0_150 = arith.constant 0 : index
      %234 = vector.load %arg20[%c0_149, %c0_150] : memref<8x64xf32, #tpu.memory_space<vmem>>, vector<8x64xf32>
      tpu.vector_store %arg20[%c0_149, %c0_150], %233 {strides = array<i32>} : memref<8x64xf32, #tpu.memory_space<vmem>>, vector<8x64xf32>,
      %c0_151 = arith.constant 0 : index
      %c0_152 = arith.constant 0 : index
      %235 = vector.load %arg13[%c0_151, %c0_152] : memref<1x64xf32, #tpu.memory_space<vmem>>, vector<1x64xf32>
      %c0_153 = arith.constant 0 : index
      %c0_154 = arith.constant 0 : index
      %236 = vector.load %arg14[%c0_153, %c0_154] : memref<1x64xf32, #tpu.memory_space<vmem>>, vector<1x64xf32>
      %cst_155 = arith.constant dense<0.000000e+00> : vector<8xf32>
      %237 = vector.multi_reduction <add>, %233, %cst_155 [1] : vector<8x64xf32> to vector<8xf32>
      %238 = vector.shape_cast %237 : vector<8xf32> to vector<8x1xf32>
      %cst_156 = arith.constant 6.400000e+01 : f32
      %239 = vector.broadcast %cst_156 : f32 to vector<8x1xf32>
      %240 = arith.divf %238, %239 : vector<8x1xf32>
      %241 = vector.broadcast %240 : vector<8x1xf32> to vector<8x64xf32>
      %242 = arith.subf %233, %241 : vector<8x64xf32>
      %243 = arith.mulf %242, %242 : vector<8x64xf32>
      %cst_157 = arith.constant dense<0.000000e+00> : vector<8xf32>
      %244 = vector.multi_reduction <add>, %243, %cst_157 [1] : vector<8x64xf32> to vector<8xf32>
      %245 = vector.shape_cast %244 : vector<8xf32> to vector<8x1xf32>
      %cst_158 = arith.constant 6.400000e+01 : f32
      %246 = vector.broadcast %cst_158 : f32 to vector<8x1xf32>
      %247 = arith.divf %245, %246 : vector<8x1xf32>
      %248 = vector.broadcast %240 : vector<8x1xf32> to vector<8x64xf32>
      %249 = arith.subf %233, %248 : vector<8x64xf32>
      %cst_159 = arith.constant 9.99999974E-6 : f32
      %250 = vector.broadcast %cst_159 : f32 to vector<8x1xf32>
      %251 = arith.addf %247, %250 : vector<8x1xf32>
      %252 = math.rsqrt %251 : vector<8x1xf32>
      %253 = vector.broadcast %252 : vector<8x1xf32> to vector<8x64xf32>
      %254 = arith.mulf %249, %253 : vector<8x64xf32>
      %255 = vector.broadcast %235 : vector<1x64xf32> to vector<8x64xf32>
      %256 = arith.mulf %254, %255 : vector<8x64xf32>
      %257 = vector.broadcast %236 : vector<1x64xf32> to vector<8x64xf32>
      %258 = arith.addf %256, %257 : vector<8x64xf32>
      %259 = arith.truncf %258 : vector<8x64xf32> to vector<8x64xbf16>
      %c0_160 = arith.constant 0 : index
      %c0_161 = arith.constant 0 : index
      %260 = vector.load %arg21[%c0_160, %c0_161] : memref<8x64xbf16, #tpu.memory_space<vmem>>, vector<8x64xbf16>
      tpu.vector_store %arg21[%c0_160, %c0_161], %259 {strides = array<i32>} : memref<8x64xbf16, #tpu.memory_space<vmem>>, vector<8x64xbf16>,
      %cst_162 = arith.constant 0.000000e+00 : f32
      %261 = vector.broadcast %cst_162 : f32 to vector<8x64xf32>
      %c0_163 = arith.constant 0 : index
      %c0_164 = arith.constant 0 : index
      %262 = vector.load %arg22[%c0_163, %c0_164] : memref<8x64xf32, #tpu.memory_space<vmem>>, vector<8x64xf32>
      tpu.vector_store %arg22[%c0_163, %c0_164], %261 {strides = array<i32>} : memref<8x64xf32, #tpu.memory_space<vmem>>, vector<8x64xf32>,
    } else {
    }
    %c0 = arith.constant 0 : index
    %c0_1 = arith.constant 0 : index
    %3 = vector.load %arg21[%c0, %c0_1] : memref<8x64xbf16, #tpu.memory_space<vmem>>, vector<8x64xbf16>
    %c0_2 = arith.constant 0 : index
    %c0_3 = arith.constant 0 : index
    %4 = vector.load %arg15[%c0_2, %c0_3] : memref<64x128xbf16, #tpu.memory_space<vmem>>, vector<64x128xbf16>
    %cst = arith.constant dense<0.000000e+00> : vector<8x128xf32>
    %5 = tpu.matmul %3, %4, %cst {dimension_numbers = #tpu.dot_dimension_numbers<[1], [0], [0], [1], [0, 0, 1, 1], [], []>} : vector<8x64xbf16>, vector<64x128xbf16>, vector<8x128xf32> -> vector<8x128xf32>
    %c0_4 = arith.constant 0 : index
    %c0_5 = arith.constant 0 : index
    %6 = vector.load %arg16[%c0_4, %c0_5] : memref<1x128xf32, #tpu.memory_space<vmem>>, vector<1x128xf32>
    %7 = vector.broadcast %6 : vector<1x128xf32> to vector<8x128xf32>
    %8 = arith.addf %5, %7 : vector<8x128xf32>
    %cst_6 = arith.constant 5.000000e-01 : f32
    %9 = vector.broadcast %cst_6 : f32 to vector<8x128xf32>
    %10 = arith.mulf %9, %8 : vector<8x128xf32>
    %cst_7 = arith.constant 0.707106769 : f32
    %11 = vector.broadcast %cst_7 : f32 to vector<8x128xf32>
    %12 = arith.mulf %8, %11 : vector<8x128xf32>
    %13 = math.erf %12 : vector<8x128xf32>
    %cst_8 = arith.constant 1.000000e+00 : f32
    %14 = vector.broadcast %cst_8 : f32 to vector<8x128xf32>
    %15 = arith.addf %14, %13 : vector<8x128xf32>
    %16 = arith.mulf %10, %15 : vector<8x128xf32>
    %c0_9 = arith.constant 0 : index
    %c0_10 = arith.constant 0 : index
    %17 = vector.load %arg22[%c0_9, %c0_10] : memref<8x64xf32, #tpu.memory_space<vmem>>, vector<8x64xf32>
    %18 = arith.truncf %16 : vector<8x128xf32> to vector<8x128xbf16>
    %c0_11 = arith.constant 0 : index
    %c0_12 = arith.constant 0 : index
    %19 = vector.load %arg17[%c0_11, %c0_12] : memref<128x64xbf16, #tpu.memory_space<vmem>>, vector<128x64xbf16>
    %cst_13 = arith.constant dense<0.000000e+00> : vector<8x64xf32>
    %20 = tpu.matmul %18, %19, %cst_13 {dimension_numbers = #tpu.dot_dimension_numbers<[1], [0], [0], [1], [0, 0, 1, 1], [], []>} : vector<8x128xbf16>, vector<128x64xbf16>, vector<8x64xf32> -> vector<8x64xf32>
    %21 = arith.addf %17, %20 : vector<8x64xf32>
    %c0_14 = arith.constant 0 : index
    %c0_15 = arith.constant 0 : index
    %22 = vector.load %arg22[%c0_14, %c0_15] : memref<8x64xf32, #tpu.memory_space<vmem>>, vector<8x64xf32>
    tpu.vector_store %arg22[%c0_14, %c0_15], %21 {strides = array<i32>} : memref<8x64xf32, #tpu.memory_space<vmem>>, vector<8x64xf32>,
    %c1_i32 = arith.constant 1 : i32
    %23 = arith.cmpi eq, %arg1, %c1_i32 : i32
    %24 = arith.extui %23 : i1 to i32
    %c0_i32_16 = arith.constant 0 : i32
    %25 = arith.cmpi ne, %24, %c0_i32_16 : i32
    scf.if %25 {
      %c0_17 = arith.constant 0 : index
      %c0_18 = arith.constant 0 : index
      %26 = vector.load %arg20[%c0_17, %c0_18] : memref<8x64xf32, #tpu.memory_space<vmem>>, vector<8x64xf32>
      %c0_19 = arith.constant 0 : index
      %c0_20 = arith.constant 0 : index
      %27 = vector.load %arg22[%c0_19, %c0_20] : memref<8x64xf32, #tpu.memory_space<vmem>>, vector<8x64xf32>
      %28 = arith.addf %26, %27 : vector<8x64xf32>
      %c0_21 = arith.constant 0 : index
      %c0_22 = arith.constant 0 : index
      %29 = vector.load %arg18[%c0_21, %c0_22] : memref<1x64xf32, #tpu.memory_space<vmem>>, vector<1x64xf32>
      %30 = vector.broadcast %29 : vector<1x64xf32> to vector<8x64xf32>
      %31 = arith.addf %28, %30 : vector<8x64xf32>
      %c0_23 = arith.constant 0 : index
      %c0_24 = arith.constant 0 : index
      %c0_25 = arith.constant 0 : index
      %32 = vector.load %arg19[%c0_23, %c0_24, %c0_25] : memref<1x8x64xf32, #tpu.memory_space<vmem>>, vector<1x8x64xf32>
      %33 = vector.shape_cast %32 : vector<1x8x64xf32> to vector<8x64xf32>
      %34 = vector.shape_cast %31 : vector<8x64xf32> to vector<1x8x64xf32>
      tpu.vector_store %arg19[%c0_23, %c0_24, %c0_25], %34 {strides = array<i32>} : memref<1x8x64xf32, #tpu.memory_space<vmem>>, vector<1x8x64xf32>,
    } else {
    }
    return
  }
  func.func @transform_0(%arg0: i32, %arg1: i32) -> (i32, i32, i32) {
    %c0_i32 = arith.constant 0 : i32
    %c0_i32_0 = arith.constant 0 : i32
    %c0_i32_1 = arith.constant 0 : i32
    return %arg0, %c0_i32, %c0_i32_0 : i32, i32, i32
  }
  func.func @transform_1(%arg0: i32, %arg1: i32) -> (i32, i32) {
    %c0_i32 = arith.constant 0 : i32
    %c0_i32_0 = arith.constant 0 : i32
    %c0_i32_1 = arith.constant 0 : i32
    return %c0_i32, %c0_i32_0 : i32, i32
  }
  func.func @transform_2(%arg0: i32, %arg1: i32) -> (i32, i32) {
    %c0_i32 = arith.constant 0 : i32
    %c0_i32_0 = arith.constant 0 : i32
    %c0_i32_1 = arith.constant 0 : i32
    return %c0_i32, %c0_i32_0 : i32, i32
  }
  func.func @transform_3(%arg0: i32, %arg1: i32) -> (i32, i32, i32) {
    %c0_i32 = arith.constant 0 : i32
    %c0_i32_0 = arith.constant 0 : i32
    %c0_i32_1 = arith.constant 0 : i32
    %c0_i32_2 = arith.constant 0 : i32
    return %c0_i32, %c0_i32_0, %c0_i32_1 : i32, i32, i32
  }
  func.func @transform_4(%arg0: i32, %arg1: i32) -> (i32, i32, i32) {
    %c0_i32 = arith.constant 0 : i32
    %c0_i32_0 = arith.constant 0 : i32
    %c0_i32_1 = arith.constant 0 : i32
    %c0_i32_2 = arith.constant 0 : i32
    return %c0_i32, %c0_i32_0, %c0_i32_1 : i32, i32, i32
  }
  func.func @transform_5(%arg0: i32, %arg1: i32) -> (i32, i32, i32) {
    %c0_i32 = arith.constant 0 : i32
    %c0_i32_0 = arith.constant 0 : i32
    %c0_i32_1 = arith.constant 0 : i32
    %c0_i32_2 = arith.constant 0 : i32
    return %c0_i32, %c0_i32_0, %c0_i32_1 : i32, i32, i32
  }
  func.func @transform_6(%arg0: i32, %arg1: i32) -> (i32, i32, i32) {
    %c0_i32 = arith.constant 0 : i32
    %c0_i32_0 = arith.constant 0 : i32
    %c0_i32_1 = arith.constant 0 : i32
    %c0_i32_2 = arith.constant 0 : i32
    return %c0_i32, %c0_i32_0, %c0_i32_1 : i32, i32, i32
  }
  func.func @transform_7(%arg0: i32, %arg1: i32) -> (i32, i32, i32) {
    %c0_i32 = arith.constant 0 : i32
    %c0_i32_0 = arith.constant 0 : i32
    %c0_i32_1 = arith.constant 0 : i32
    %c0_i32_2 = arith.constant 0 : i32
    return %c0_i32, %c0_i32_0, %c0_i32_1 : i32, i32, i32
  }
  func.func @transform_8(%arg0: i32, %arg1: i32) -> (i32, i32, i32) {
    %c0_i32 = arith.constant 0 : i32
    %c0_i32_0 = arith.constant 0 : i32
    %c0_i32_1 = arith.constant 0 : i32
    %c0_i32_2 = arith.constant 0 : i32
    return %c0_i32, %c0_i32_0, %c0_i32_1 : i32, i32, i32
  }
  func.func @transform_9(%arg0: i32, %arg1: i32) -> (i32, i32, i32) {
    %c0_i32 = arith.constant 0 : i32
    %c0_i32_0 = arith.constant 0 : i32
    %c0_i32_1 = arith.constant 0 : i32
    %c0_i32_2 = arith.constant 0 : i32
    return %c0_i32, %c0_i32_0, %c0_i32_1 : i32, i32, i32
  }
  func.func @transform_10(%arg0: i32, %arg1: i32) -> (i32, i32) {
    %c0_i32 = arith.constant 0 : i32
    %c0_i32_0 = arith.constant 0 : i32
    %c0_i32_1 = arith.constant 0 : i32
    return %c0_i32, %c0_i32_0 : i32, i32
  }
  func.func @transform_11(%arg0: i32, %arg1: i32) -> (i32, i32) {
    %c0_i32 = arith.constant 0 : i32
    %c0_i32_0 = arith.constant 0 : i32
    %c0_i32_1 = arith.constant 0 : i32
    return %c0_i32, %c0_i32_0 : i32, i32
  }
  func.func @transform_12(%arg0: i32, %arg1: i32) -> (i32, i32) {
    %c0_i32 = arith.constant 0 : i32
    %c0_i32_0 = arith.constant 0 : i32
    %c0_i32_1 = arith.constant 0 : i32
    return %c0_i32, %c0_i32_0 : i32, i32
  }
  func.func @transform_13(%arg0: i32, %arg1: i32) -> (i32, i32) {
    %c0_i32 = arith.constant 0 : i32
    %c0_i32_0 = arith.constant 0 : i32
    return %c0_i32, %arg1 : i32, i32
  }
  func.func @transform_14(%arg0: i32, %arg1: i32) -> (i32, i32) {
    %c0_i32 = arith.constant 0 : i32
    %c0_i32_0 = arith.constant 0 : i32
    return %c0_i32, %arg1 : i32, i32
  }
  func.func @transform_15(%arg0: i32, %arg1: i32) -> (i32, i32) {
    %c0_i32 = arith.constant 0 : i32
    %c0_i32_0 = arith.constant 0 : i32
    return %arg1, %c0_i32 : i32, i32
  }
  func.func @transform_16(%arg0: i32, %arg1: i32) -> (i32, i32) {
    %c0_i32 = arith.constant 0 : i32
    %c0_i32_0 = arith.constant 0 : i32
    %c0_i32_1 = arith.constant 0 : i32
    return %c0_i32, %c0_i32_0 : i32, i32
  }
  func.func @transform_17(%arg0: i32, %arg1: i32) -> (i32, i32, i32) {
    %c0_i32 = arith.constant 0 : i32
    %c0_i32_0 = arith.constant 0 : i32
    %c0_i32_1 = arith.constant 0 : i32
    return %arg0, %c0_i32, %c0_i32_0 : i32, i32, i32
  }
}

</mosaic_0001>

<llo_original>
// kernel: tpu_custom_call.1
$region0: #{tpu_custom_call.1}
  #allocation0 [shape = 'u32[]', space=smem, size = 0x4, offset = 0x4, fixed_abs, tag = 'smem constant byte address 0x4 - core index']
  #allocation1 [shape = 'u32[72,128]{1,0:T(1,128)}', space=vmem, size = 0x9000, scoped, tag = 'internal scratch']
  #allocation2 [shape = 'f32[8,64]{1,0:T(8,128)}', space=vmem, size = 0x1000, scoped, tag = 'scratch operand']
  #allocation3 [shape = 'bf16[8,64]{1,0:T(8,128)(2,1)}', space=vmem, size = 0x800, scoped, tag = 'scratch operand']
  #allocation4 [shape = 'f32[8,64]{1,0:T(8,128)}', space=vmem, size = 0x1000, scoped, tag = 'scratch operand']
  %s0 = inlined_call_operand.vmem [shape: f32[2,8,64], index: 0, kind: input, shape index: {}]
  %s1 = inlined_call_operand.vmem [shape: f32[1,64], index: 1, kind: input, shape index: {}]
  %s2 = inlined_call_operand.vmem [shape: f32[1,64], index: 2, kind: input, shape index: {}]
  %s3 = inlined_call_operand.vmem [shape: bf16[4,64,16], index: 3, kind: input, shape index: {}]
  %s4 = inlined_call_operand.vmem [shape: f32[4,1,16], index: 4, kind: input, shape index: {}]
  %s5 = inlined_call_operand.vmem [shape: bf16[4,64,16], index: 5, kind: input, shape index: {}]
  %s6 = inlined_call_operand.vmem [shape: f32[4,1,16], index: 6, kind: input, shape index: {}]
  %s7 = inlined_call_operand.vmem [shape: bf16[4,64,16], index: 7, kind: input, shape index: {}]
  %s8 = inlined_call_operand.vmem [shape: f32[4,1,16], index: 8, kind: input, shape index: {}]
  %s9 = inlined_call_operand.vmem [shape: bf16[4,16,64], index: 9, kind: input, shape index: {}]
  %s10 = inlined_call_operand.vmem [shape: f32[1,64], index: 10, kind: input, shape index: {}]
  %s11 = inlined_call_operand.vmem [shape: f32[1,64], index: 11, kind: input, shape index: {}]
  %s12 = inlined_call_operand.vmem [shape: f32[1,64], index: 12, kind: input, shape index: {}]
  %s13 = inlined_call_operand.vmem [shape: bf16[64,256], index: 13, kind: input, shape index: {}]
  %s14 = inlined_call_operand.vmem [shape: f32[1,256], index: 14, kind: input, shape index: {}]
  %s15 = inlined_call_operand.vmem [shape: bf16[256,64], index: 15, kind: input, shape index: {}]
  %s16 = inlined_call_operand.vmem [shape: f32[1,64], index: 16, kind: input, shape index: {}]
  %s17 = inlined_call_operand.hbm [shape: f32[2,8,64], index: 17, kind: output, shape index: {}]
  %s18 = sld [smem:[#allocation0]]
  $region150: #{tpu_custom_call.1} parent=0
    _
  %s20 = ssub.s32 1, %s18
  %s21 = scalar_select 0, %s20, %s18
  $region1: #{tpu_custom_call.1} parent=0
    #allocation5 [shape = 'u8[32768]{0}', space=vmem, size = 0x8000, scoped, tag = 'input window, operand 13']
    #allocation6 [shape = 'u8[8192]{0}', space=vmem, size = 0x2000, scoped, tag = 'output window, operand 0']
    #allocation7 [shape = 's32[2]{0}', space=sflag, size = 0x8, scoped, tag = 'scoped memory for tpu_custom_call.1']
    %22 = vsyncpa [#allocation7], 0
    %s23 = scalar_lea.sflag [#allocation7], 1
    %24 = vsyncpa %s23, 0
    loop: start=0, step=1, limit=6
    $region2: #{tpu_custom_call.1} parent=1 // loop_pre_header
      _
    $region3: #{tpu_custom_call.1} parent=1 // loop_header
      %s26 = sphi 0, %s30
      %p27 = scmp.ge.s32.totalorder %s26, 6
      %s33 = sphi 0, %s45
      %s34 = sphi 0, %s41
      %s35 = sphi 0, %s33
      %s36 = sphi 0, %s34
      %s37 = sphi 0, %s35
      %s38 = sphi 0, %s36
      %s48 = sphi 0, %s50
      %s51 = sphi 0, %s48
      %s52 = sphi 0, %s51
      %s68 = sphi 0, %s52
      %s72 = sphi 0, %s72
      %s74 = sphi 0, %s72
      %s75 = sphi 0, %s74
      %s89 = sphi 0, %s75
      %s93 = sphi 0, %s93
      %s95 = sphi 0, %s93
      %s96 = sphi 0, %s95
      %s110 = sphi 0, %s96
      %s114 = sphi 0, %s114
      %s116 = sphi 0, %s114
      %s117 = sphi 0, %s116
      %s131 = sphi 0, %s117
      %s135 = sphi 0, %s135
      %s137 = sphi 0, %s135
      %s138 = sphi 0, %s137
      %s152 = sphi 0, %s138
      %s156 = sphi 0, %s156
      %s158 = sphi 0, %s156
      %s159 = sphi 0, %s158
      %s173 = sphi 0, %s159
      %s177 = sphi 0, %s177
      %s179 = sphi 0, %s177
      %s180 = sphi 0, %s179
      %s194 = sphi 0, %s180
      %s198 = sphi 0, %s198
      %s200 = sphi 0, %s198
      %s201 = sphi 0, %s200
      %s215 = sphi 0, %s201
      %s219 = sphi 0, %s219
      %s221 = sphi 0, %s219
      %s222 = sphi 0, %s221
      %s236 = sphi 0, %s222
      %s240 = sphi 0, %s240
      %s242 = sphi 0, %s240
      %s243 = sphi 0, %s242
      %s257 = sphi 0, %s243
      %s261 = sphi 0, %s261
      %s263 = sphi 0, %s261
      %s264 = sphi 0, %s263
      %s278 = sphi 0, %s264
      %s282 = sphi 0, %s282
      %s284 = sphi 0, %s282
      %s285 = sphi 0, %s284
      %s299 = sphi 0, %s285
      %s303 = sphi 0, %s303
      %s305 = sphi 0, %s303
      %s306 = sphi 0, %s305
      %s320 = sphi 0, %s306
      %s326 = sphi 0, %s328
      %s329 = sphi 0, %s326
      %s330 = sphi 0, %s329
      %s346 = sphi 0, %s330
      %s352 = sphi 0, %s354
      %s355 = sphi 0, %s352
      %s356 = sphi 0, %s355
      %s372 = sphi 0, %s356
      %s378 = sphi 0, %s380
      %s381 = sphi 0, %s378
      %s382 = sphi 0, %s381
      %s398 = sphi 0, %s382
      %s402 = sphi 0, %s402
      %s404 = sphi 0, %s402
      %s405 = sphi 0, %s404
      %s419 = sphi 0, %s405
      %s425 = sphi 0, %s427
      %s428 = sphi 0, %s425
      %s429 = sphi 0, %s428
      %s445 = sphi 0, %s429
    $region4: #{tpu_custom_call.1} parent=1 // loop_header_branch
      %29 = sbr.rel (%p27) target = $region8
    $region5: #{tpu_custom_call.1} parent=1 // loop_body
      %s31 = ssub.s32 %s26, 1
      %s32 = ssub.s32 %s26, 2
      %s39 = sadd.s32 1, %s34
      %p40 = scmp.ge.s32.totalorder %s39, 2
      %s41 = scalar_select %p40, 0, %s39
      %s42 = sadd.s32 1, %s33
      %s43 = scalar_select %p40, %s42, %s33
      %p44 = scmp.ge.s32.totalorder %s43, 2
      %s45 = scalar_select %p44, 0, %s43
      %s46 = ssub.s32 %s33, %s45
      %p47 = scmp.eq.s32.totalorder %s46, 0
      %s49 = sadd.s32 %s48, 1
      %s50 = scalar_select %p47, %s48, %s49
      %p53 = pneg %p47
      %p54 = scmp.eq.s32.totalorder %s26, 3
      %p55 = por %p53, %p54
      %p56 = scmp.ne.s32.totalorder %s48, %s51
      %p57 = scmp.eq.s32.totalorder %s26, 0
      %p58 = por %p56, %p57
      %p59 = scmp.ne.s32.totalorder %s48, %s51
      %p60 = scmp.eq.s32.totalorder %s31, 3
      %p61 = por %p59, %p60
      %p62 = scmp.ne.s32.totalorder %s51, %s52
      %p63 = scmp.eq.s32.totalorder %s31, 0
      %p64 = por %p62, %p63
      %p65 = scmp.ne.s32.totalorder %s51, %s52
      %p66 = scmp.eq.s32.totalorder %s32, 3
      %p67 = por %p65, %p66
      %p69 = scmp.ne.s32.totalorder %s52, %s68
      %p70 = scmp.eq.s32.totalorder %s32, 0
      %p71 = por %p69, %p70
      %s73 = sadd.s32 %s72, 1
      %p76 = scmp.eq.s32.totalorder %s26, 3
      %p77 = scmp.ne.s32.totalorder %s72, %s74
      %p78 = scmp.eq.s32.totalorder %s26, 0
      %p79 = por %p77, %p78
      %p80 = scmp.ne.s32.totalorder %s72, %s74
      %p81 = scmp.eq.s32.totalorder %s31, 3
      %p82 = por %p80, %p81
      %p83 = scmp.ne.s32.totalorder %s74, %s75
      %p84 = scmp.eq.s32.totalorder %s31, 0
      %p85 = por %p83, %p84
      %p86 = scmp.ne.s32.totalorder %s74, %s75
      %p87 = scmp.eq.s32.totalorder %s32, 3
      %p88 = por %p86, %p87
      %p90 = scmp.ne.s32.totalorder %s75, %s89
      %p91 = scmp.eq.s32.totalorder %s32, 0
      %p92 = por %p90, %p91
      %s94 = sadd.s32 %s93, 1
      %p97 = scmp.eq.s32.totalorder %s26, 3
      %p98 = scmp.ne.s32.totalorder %s93, %s95
      %p99 = scmp.eq.s32.totalorder %s26, 0
      %p100 = por %p98, %p99
      %p101 = scmp.ne.s32.totalorder %s93, %s95
      %p102 = scmp.eq.s32.totalorder %s31, 3
      %p103 = por %p101, %p102
      %p104 = scmp.ne.s32.totalorder %s95, %s96
      %p105 = scmp.eq.s32.totalorder %s31, 0
      %p106 = por %p104, %p105
      %p107 = scmp.ne.s32.totalorder %s95, %s96
      %p108 = scmp.eq.s32.totalorder %s32, 3
      %p109 = por %p107, %p108
      %p111 = scmp.ne.s32.totalorder %s96, %s110
      %p112 = scmp.eq.s32.totalorder %s32, 0
      %p113 = por %p111, %p112
      %s115 = sadd.s32 %s114, 1
      %p118 = scmp.eq.s32.totalorder %s26, 3
      %p119 = scmp.ne.s32.totalorder %s114, %s116
      %p120 = scmp.eq.s32.totalorder %s26, 0
      %p121 = por %p119, %p120
      %p122 = scmp.ne.s32.totalorder %s114, %s116
      %p123 = scmp.eq.s32.totalorder %s31, 3
      %p124 = por %p122, %p123
      %p125 = scmp.ne.s32.totalorder %s116, %s117
      %p126 = scmp.eq.s32.totalorder %s31, 0
      %p127 = por %p125, %p126
      %p128 = scmp.ne.s32.totalorder %s116, %s117
      %p129 = scmp.eq.s32.totalorder %s32, 3
      %p130 = por %p128, %p129
      %p132 = scmp.ne.s32.totalorder %s117, %s131
      %p133 = scmp.eq.s32.totalorder %s32, 0
      %p134 = por %p132, %p133
      %s136 = sadd.s32 %s135, 1
      %p139 = scmp.eq.s32.totalorder %s26, 3
      %p140 = scmp.ne.s32.totalorder %s135, %s137
      %p141 = scmp.eq.s32.totalorder %s26, 0
      %p142 = por %p140, %p141
      %p143 = scmp.ne.s32.totalorder %s135, %s137
      %p144 = scmp.eq.s32.totalorder %s31, 3
      %p145 = por %p143, %p144
      %p146 = scmp.ne.s32.totalorder %s137, %s138
      %p147 = scmp.eq.s32.totalorder %s31, 0
      %p148 = por %p146, %p147
      %p149 = scmp.ne.s32.totalorder %s137, %s138
      %p150 = scmp.eq.s32.totalorder %s32, 3
      %p151 = por %p149, %p150
      %p153 = scmp.ne.s32.totalorder %s138, %s152
      %p154 = scmp.eq.s32.totalorder %s32, 0
      %p155 = por %p153, %p154
      %s157 = sadd.s32 %s156, 1
      %p160 = scmp.eq.s32.totalorder %s26, 3
      %p161 = scmp.ne.s32.totalorder %s156, %s158
      %p162 = scmp.eq.s32.totalorder %s26, 0
      %p163 = por %p161, %p162
      %p164 = scmp.ne.s32.totalorder %s156, %s158
      %p165 = scmp.eq.s32.totalorder %s31, 3
      %p166 = por %p164, %p165
      %p167 = scmp.ne.s32.totalorder %s158, %s159
      %p168 = scmp.eq.s32.totalorder %s31, 0
      %p169 = por %p167, %p168
      %p170 = scmp.ne.s32.totalorder %s158, %s159
      %p171 = scmp.eq.s32.totalorder %s32, 3
      %p172 = por %p170, %p171
      %p174 = scmp.ne.s32.totalorder %s159, %s173
      %p175 = scmp.eq.s32.totalorder %s32, 0
      %p176 = por %p174, %p175
      %s178 = sadd.s32 %s177, 1
      %p181 = scmp.eq.s32.totalorder %s26, 3
      %p182 = scmp.ne.s32.totalorder %s177, %s179
      %p183 = scmp.eq.s32.totalorder %s26, 0
      %p184 = por %p182, %p183
      %p185 = scmp.ne.s32.totalorder %s177, %s179
      %p186 = scmp.eq.s32.totalorder %s31, 3
      %p187 = por %p185, %p186
      %p188 = scmp.ne.s32.totalorder %s179, %s180
      %p189 = scmp.eq.s32.totalorder %s31, 0
      %p190 = por %p188, %p189
      %p191 = scmp.ne.s32.totalorder %s179, %s180
      %p192 = scmp.eq.s32.totalorder %s32, 3
      %p193 = por %p191, %p192
      %p195 = scmp.ne.s32.totalorder %s180, %s194
      %p196 = scmp.eq.s32.totalorder %s32, 0
      %p197 = por %p195, %p196
      %s199 = sadd.s32 %s198, 1
      %p202 = scmp.eq.s32.totalorder %s26, 3
      %p203 = scmp.ne.s32.totalorder %s198, %s200
      %p204 = scmp.eq.s32.totalorder %s26, 0
      %p205 = por %p203, %p204
      %p206 = scmp.ne.s32.totalorder %s198, %s200
      %p207 = scmp.eq.s32.totalorder %s31, 3
      %p208 = por %p206, %p207
      %p209 = scmp.ne.s32.totalorder %s200, %s201
      %p210 = scmp.eq.s32.totalorder %s31, 0
      %p211 = por %p209, %p210
      %p212 = scmp.ne.s32.totalorder %s200, %s201
      %p213 = scmp.eq.s32.totalorder %s32, 3
      %p214 = por %p212, %p213
      %p216 = scmp.ne.s32.totalorder %s201, %s215
      %p217 = scmp.eq.s32.totalorder %s32, 0
      %p218 = por %p216, %p217
      %s220 = sadd.s32 %s219, 1
      %p223 = scmp.eq.s32.totalorder %s26, 3
      %p224 = scmp.ne.s32.totalorder %s219, %s221
      %p225 = scmp.eq.s32.totalorder %s26, 0
      %p226 = por %p224, %p225
      %p227 = scmp.ne.s32.totalorder %s219, %s221
      %p228 = scmp.eq.s32.totalorder %s31, 3
      %p229 = por %p227, %p228
      %p230 = scmp.ne.s32.totalorder %s221, %s222
      %p231 = scmp.eq.s32.totalorder %s31, 0
      %p232 = por %p230, %p231
      %p233 = scmp.ne.s32.totalorder %s221, %s222
      %p234 = scmp.eq.s32.totalorder %s32, 3
      %p235 = por %p233, %p234
      %p237 = scmp.ne.s32.totalorder %s222, %s236
      %p238 = scmp.eq.s32.totalorder %s32, 0
      %p239 = por %p237, %p238
      %s241 = sadd.s32 %s240, 1
      %p244 = scmp.eq.s32.totalorder %s26, 3
      %p245 = scmp.ne.s32.totalorder %s240, %s242
      %p246 = scmp.eq.s32.totalorder %s26, 0
      %p247 = por %p245, %p246
      %p248 = scmp.ne.s32.totalorder %s240, %s242
      %p249 = scmp.eq.s32.totalorder %s31, 3
      %p250 = por %p248, %p249
      %p251 = scmp.ne.s32.totalorder %s242, %s243
      %p252 = scmp.eq.s32.totalorder %s31, 0
      %p253 = por %p251, %p252
      %p254 = scmp.ne.s32.totalorder %s242, %s243
      %p255 = scmp.eq.s32.totalorder %s32, 3
      %p256 = por %p254, %p255
      %p258 = scmp.ne.s32.totalorder %s243, %s257
      %p259 = scmp.eq.s32.totalorder %s32, 0
      %p260 = por %p258, %p259
      %s262 = sadd.s32 %s261, 1
      %p265 = scmp.eq.s32.totalorder %s26, 3
      %p266 = scmp.ne.s32.totalorder %s261, %s263
      %p267 = scmp.eq.s32.totalorder %s26, 0
      %p268 = por %p266, %p267
      %p269 = scmp.ne.s32.totalorder %s261, %s263
      %p270 = scmp.eq.s32.totalorder %s31, 3
      %p271 = por %p269, %p270
      %p272 = scmp.ne.s32.totalorder %s263, %s264
      %p273 = scmp.eq.s32.totalorder %s31, 0
      %p274 = por %p272, %p273
      %p275 = scmp.ne.s32.totalorder %s263, %s264
      %p276 = scmp.eq.s32.totalorder %s32, 3
      %p277 = por %p275, %p276
      %p279 = scmp.ne.s32.totalorder %s264, %s278
      %p280 = scmp.eq.s32.totalorder %s32, 0
      %p281 = por %p279, %p280
      %s283 = sadd.s32 %s282, 1
      %p286 = scmp.eq.s32.totalorder %s26, 3
      %p287 = scmp.ne.s32.totalorder %s282, %s284
      %p288 = scmp.eq.s32.totalorder %s26, 0
      %p289 = por %p287, %p288
      %p290 = scmp.ne.s32.totalorder %s282, %s284
      %p291 = scmp.eq.s32.totalorder %s31, 3
      %p292 = por %p290, %p291
      %p293 = scmp.ne.s32.totalorder %s284, %s285
      %p294 = scmp.eq.s32.totalorder %s31, 0
      %p295 = por %p293, %p294
      %p296 = scmp.ne.s32.totalorder %s284, %s285
      %p297 = scmp.eq.s32.totalorder %s32, 3
      %p298 = por %p296, %p297
      %p300 = scmp.ne.s32.totalorder %s285, %s299
      %p301 = scmp.eq.s32.totalorder %s32, 0
      %p302 = por %p300, %p301
      %s304 = sadd.s32 %s303, 1
      %p307 = scmp.eq.s32.totalorder %s26, 3
      %p308 = scmp.ne.s32.totalorder %s303, %s305
      %p309 = scmp.eq.s32.totalorder %s26, 0
      %p310 = por %p308, %p309
      %p311 = scmp.ne.s32.totalorder %s303, %s305
      %p312 = scmp.eq.s32.totalorder %s31, 3
      %p313 = por %p311, %p312
      %p314 = scmp.ne.s32.totalorder %s305, %s306
      %p315 = scmp.eq.s32.totalorder %s31, 0
      %p316 = por %p314, %p315
      %p317 = scmp.ne.s32.totalorder %s305, %s306
      %p318 = scmp.eq.s32.totalorder %s32, 3
      %p319 = por %p317, %p318
      %p321 = scmp.ne.s32.totalorder %s306, %s320
      %p322 = scmp.eq.s32.totalorder %s32, 0
      %p323 = por %p321, %p322
      %s324 = ssub.s32 %s34, %s41
      %p325 = scmp.eq.s32.totalorder %s324, 0
      %s327 = sadd.s32 %s326, 1
      %s328 = scalar_select %p325, %s326, %s327
      %p331 = pneg %p325
      %p332 = scmp.eq.s32.totalorder %s26, 3
      %p333 = por %p331, %p332
      %p334 = scmp.ne.s32.totalorder %s326, %s329
      %p335 = scmp.eq.s32.totalorder %s26, 0
      %p336 = por %p334, %p335
      %p337 = scmp.ne.s32.totalorder %s326, %s329
      %p338 = scmp.eq.s32.totalorder %s31, 3
      %p339 = por %p337, %p338
      %p340 = scmp.ne.s32.totalorder %s329, %s330
      %p341 = scmp.eq.s32.totalorder %s31, 0
      %p342 = por %p340, %p341
      %p343 = scmp.ne.s32.totalorder %s329, %s330
      %p344 = scmp.eq.s32.totalorder %s32, 3
      %p345 = por %p343, %p344
      %p347 = scmp.ne.s32.totalorder %s330, %s346
      %p348 = scmp.eq.s32.totalorder %s32, 0
      %p349 = por %p347, %p348
      %s350 = ssub.s32 %s34, %s41
      %p351 = scmp.eq.s32.totalorder %s350, 0
      %s353 = sadd.s32 %s352, 1
      %s354 = scalar_select %p351, %s352, %s353
      %p357 = pneg %p351
      %p358 = scmp.eq.s32.totalorder %s26, 3
      %p359 = por %p357, %p358
      %p360 = scmp.ne.s32.totalorder %s352, %s355
      %p361 = scmp.eq.s32.totalorder %s26, 0
      %p362 = por %p360, %p361
      %p363 = scmp.ne.s32.totalorder %s352, %s355
      %p364 = scmp.eq.s32.totalorder %s31, 3
      %p365 = por %p363, %p364
      %p366 = scmp.ne.s32.totalorder %s355, %s356
      %p367 = scmp.eq.s32.totalorder %s31, 0
      %p368 = por %p366, %p367
      %p369 = scmp.ne.s32.totalorder %s355, %s356
      %p370 = scmp.eq.s32.totalorder %s32, 3
      %p371 = por %p369, %p370
      %p373 = scmp.ne.s32.totalorder %s356, %s372
      %p374 = scmp.eq.s32.totalorder %s32, 0
      %p375 = por %p373, %p374
      %s376 = ssub.s32 %s34, %s41
      %p377 = scmp.eq.s32.totalorder %s376, 0
      %s379 = sadd.s32 %s378, 1
      %s380 = scalar_select %p377, %s378, %s379
      %p383 = pneg %p377
      %p384 = scmp.eq.s32.totalorder %s26, 3
      %p385 = por %p383, %p384
      %p386 = scmp.ne.s32.totalorder %s378, %s381
      %p387 = scmp.eq.s32.totalorder %s26, 0
      %p388 = por %p386, %p387
      %p389 = scmp.ne.s32.totalorder %s378, %s381
      %p390 = scmp.eq.s32.totalorder %s31, 3
      %p391 = por %p389, %p390
      %p392 = scmp.ne.s32.totalorder %s381, %s382
      %p393 = scmp.eq.s32.totalorder %s31, 0
      %p394 = por %p392, %p393
      %p395 = scmp.ne.s32.totalorder %s381, %s382
      %p396 = scmp.eq.s32.totalorder %s32, 3
      %p397 = por %p395, %p396
      %p399 = scmp.ne.s32.totalorder %s382, %s398
      %p400 = scmp.eq.s32.totalorder %s32, 0
      %p401 = por %p399, %p400
      %s403 = sadd.s32 %s402, 1
      %p406 = scmp.eq.s32.totalorder %s26, 3
      %p407 = scmp.ne.s32.totalorder %s402, %s404
      %p408 = scmp.eq.s32.totalorder %s26, 0
      %p409 = por %p407, %p408
      %p410 = scmp.ne.s32.totalorder %s402, %s404
      %p411 = scmp.eq.s32.totalorder %s31, 3
      %p412 = por %p410, %p411
      %p413 = scmp.ne.s32.totalorder %s404, %s405
      %p414 = scmp.eq.s32.totalorder %s31, 0
      %p415 = por %p413, %p414
      %p416 = scmp.ne.s32.totalorder %s404, %s405
      %p417 = scmp.eq.s32.totalorder %s32, 3
      %p418 = por %p416, %p417
      %p420 = scmp.ne.s32.totalorder %s405, %s419
      %p421 = scmp.eq.s32.totalorder %s32, 0
      %p422 = por %p420, %p421
      %s423 = ssub.s32 %s33, %s45
      %p424 = scmp.eq.s32.totalorder %s423, 0
      %s426 = sadd.s32 %s425, 1
      %s427 = scalar_select %p424, %s425, %s426
      %p430 = pneg %p424
      %p431 = scmp.eq.s32.totalorder %s26, 3
      %p432 = por %p430, %p431
      %p433 = scmp.ne.s32.totalorder %s425, %s428
      %p434 = scmp.eq.s32.totalorder %s26, 0
      %p435 = por %p433, %p434
      %p436 = scmp.ne.s32.totalorder %s425, %s428
      %p437 = scmp.eq.s32.totalorder %s31, 3
      %p438 = por %p436, %p437
      %p439 = scmp.ne.s32.totalorder %s428, %s429
      %p440 = scmp.eq.s32.totalorder %s31, 0
      %p441 = por %p439, %p440
      %p442 = scmp.ne.s32.totalorder %s428, %s429
      %p443 = scmp.eq.s32.totalorder %s32, 3
      %p444 = por %p442, %p443
      %p446 = scmp.ne.s32.totalorder %s429, %s445
      %p447 = scmp.eq.s32.totalorder %s32, 0
      %p448 = por %p446, %p447
      %p449 = scmp.le.s32.totalorder 1, %s26
      %p450 = scmp.lt.s32.totalorder %s26, 5
      %p451 = pnand %p449, %p450
      %p452 = pneg %p451
      // Predicated region
      $region9: #{tpu_custom_call.1} parent=5 // pred_check
        _
      $region10: #{tpu_custom_call.1} parent=5 // pred_check_branch
        %454 = sbr.rel (%p451) target = $region12
      $region11: #{tpu_custom_call.1} parent=5 // pred_region
        %s455 = ssub.s32 %s26, 1
        // Predicated region
        $region13: #{tpu_custom_call.1} parent=11 // pred_check
          %p456 = pneg %p85
        $region14: #{tpu_custom_call.1} parent=11 // pred_check_branch
          %458 = sbr.rel (%p456) target = $region16
        $region15: #{tpu_custom_call.1} parent=11 // pred_region
          _
        $region16: #{tpu_custom_call.1} parent=11 // pred_fallthru
          _
        // Predicated region
        $region17: #{tpu_custom_call.1} parent=11 // pred_check
          %p459 = pneg %p106
        $region18: #{tpu_custom_call.1} parent=11 // pred_check_branch
          %461 = sbr.rel (%p459) target = $region20
        $region19: #{tpu_custom_call.1} parent=11 // pred_region
          _
        $region20: #{tpu_custom_call.1} parent=11 // pred_fallthru
          _
        // Predicated region
        $region21: #{tpu_custom_call.1} parent=11 // pred_check
          %p462 = pneg %p127
        $region22: #{tpu_custom_call.1} parent=11 // pred_check_branch
          %464 = sbr.rel (%p462) target = $region24
        $region23: #{tpu_custom_call.1} parent=11 // pred_region
          _
        $region24: #{tpu_custom_call.1} parent=11 // pred_fallthru
          _
        // Predicated region
        $region25: #{tpu_custom_call.1} parent=11 // pred_check
          %p465 = pneg %p148
        $region26: #{tpu_custom_call.1} parent=11 // pred_check_branch
          %467 = sbr.rel (%p465) target = $region28
        $region27: #{tpu_custom_call.1} parent=11 // pred_region
          _
        $region28: #{tpu_custom_call.1} parent=11 // pred_fallthru
          _
        // Predicated region
        $region29: #{tpu_custom_call.1} parent=11 // pred_check
          %p468 = pneg %p169
        $region30: #{tpu_custom_call.1} parent=11 // pred_check_branch
          %470 = sbr.rel (%p468) target = $region32
        $region31: #{tpu_custom_call.1} parent=11 // pred_region
          _
        $region32: #{tpu_custom_call.1} parent=11 // pred_fallthru
          _
        // Predicated region
        $region33: #{tpu_custom_call.1} parent=11 // pred_check
          %p471 = pneg %p190
        $region34: #{tpu_custom_call.1} parent=11 // pred_check_branch
          %473 = sbr.rel (%p471) target = $region36
        $region35: #{tpu_custom_call.1} parent=11 // pred_region
          _
        $region36: #{tpu_custom_call.1} parent=11 // pred_fallthru
          _
        // Predicated region
        $region37: #{tpu_custom_call.1} parent=11 // pred_check
          %p474 = pneg %p211
        $region38: #{tpu_custom_call.1} parent=11 // pred_check_branch
          %476 = sbr.rel (%p474) target = $region40
        $region39: #{tpu_custom_call.1} parent=11 // pred_region
          _
        $region40: #{tpu_custom_call.1} parent=11 // pred_fallthru
          _
        // Predicated region
        $region41: #{tpu_custom_call.1} parent=11 // pred_check
          %p477 = pneg %p232
        $region42: #{tpu_custom_call.1} parent=11 // pred_check_branch
          %479 = sbr.rel (%p477) target = $region44
        $region43: #{tpu_custom_call.1} parent=11 // pred_region
          _
        $region44: #{tpu_custom_call.1} parent=11 // pred_fallthru
          _
        // Predicated region
        $region45: #{tpu_custom_call.1} parent=11 // pred_check
          %p480 = pneg %p253
        $region46: #{tpu_custom_call.1} parent=11 // pred_check_branch
          %482 = sbr.rel (%p480) target = $region48
        $region47: #{tpu_custom_call.1} parent=11 // pred_region
          _
        $region48: #{tpu_custom_call.1} parent=11 // pred_fallthru
          _
        // Predicated region
        $region49: #{tpu_custom_call.1} parent=11 // pred_check
          %p483 = pneg %p274
        $region50: #{tpu_custom_call.1} parent=11 // pred_check_branch
          %485 = sbr.rel (%p483) target = $region52
        $region51: #{tpu_custom_call.1} parent=11 // pred_region
          _
        $region52: #{tpu_custom_call.1} parent=11 // pred_fallthru
          _
        // Predicated region
        $region53: #{tpu_custom_call.1} parent=11 // pred_check
          %p486 = pneg %p295
        $region54: #{tpu_custom_call.1} parent=11 // pred_check_branch
          %488 = sbr.rel (%p486) target = $region56
        $region55: #{tpu_custom_call.1} parent=11 // pred_region
          _
        $region56: #{tpu_custom_call.1} parent=11 // pred_fallthru
          _
        // Predicated region
        $region57: #{tpu_custom_call.1} parent=11 // pred_check
          %p489 = pneg %p316
        $region58: #{tpu_custom_call.1} parent=11 // pred_check_branch
          %491 = sbr.rel (%p489) target = $region60
        $region59: #{tpu_custom_call.1} parent=11 // pred_region
          _
        $region60: #{tpu_custom_call.1} parent=11 // pred_fallthru
          _
        // Predicated region
        $region61: #{tpu_custom_call.1} parent=11 // pred_check
          %p492 = pneg %p415
        $region62: #{tpu_custom_call.1} parent=11 // pred_check_branch
          %494 = sbr.rel (%p492) target = $region64
        $region63: #{tpu_custom_call.1} parent=11 // pred_region
          _
        $region64: #{tpu_custom_call.1} parent=11 // pred_fallthru
          _
      $region12: #{tpu_custom_call.1} parent=5 // pred_fallthru
        _
      %p495 = scmp.lt.s32.totalorder %s26, 4
      // Predicated region
      $region65: #{tpu_custom_call.1} parent=5 // pred_check
        %p496 = pneg %p495
      $region66: #{tpu_custom_call.1} parent=5 // pred_check_branch
        %498 = sbr.rel (%p496) target = $region68
      $region67: #{tpu_custom_call.1} parent=5 // pred_region
        // Predicated region
        $region69: #{tpu_custom_call.1} parent=67 // pred_check
          %p499 = pneg %p58
        $region70: #{tpu_custom_call.1} parent=67 // pred_check_branch
          %501 = sbr.rel (%p499) target = $region72
        $region71: #{tpu_custom_call.1} parent=67 // pred_region
          %p502 = scmp.lt.s32.totalorder %s33, 1
          %s503 = scalar_select %p502, %s33, 1
          %s504 = smul.addr %s503, 8
          %s505 = scalar_lea.vmem %s0, %s504
        $region72: #{tpu_custom_call.1} parent=67 // pred_fallthru
          _
        // Predicated region
        $region73: #{tpu_custom_call.1} parent=67 // pred_check
          %p506 = pneg %p336
        $region74: #{tpu_custom_call.1} parent=67 // pred_check_branch
          %508 = sbr.rel (%p506) target = $region76
        $region75: #{tpu_custom_call.1} parent=67 // pred_region
          %s509 = sand.u32 %s326, 1
          %s510 = sand.u32 %s326, 1
          %s511 = smul.addr %s510, 32
          %s512 = scalar_lea.vmem [#allocation5], %s511
          %s513 = smul.addr %s34, 4
          %s514 = scalar_lea.vmem %s13, %s513
          // Predicated region
          $region77: #{tpu_custom_call.1} parent=75 // pred_check
            _
          $region78: #{tpu_custom_call.1} parent=75 // pred_check_branch
            %516 = sbr.rel (0) target = $region80
          $region79: #{tpu_custom_call.1} parent=75 // pred_region
            // Predicated region
            $region81: #{tpu_custom_call.1} parent=79 // pred_check
              _
            $region82: #{tpu_custom_call.1} parent=79 // pred_check_branch
              %518 = sbr.rel target = $region84
            $region83: #{tpu_custom_call.1} parent=79 // pred_region
              // Predicated region
              $region96: #{tpu_custom_call.1} parent=83 // pred_check
                _
              $region97: #{tpu_custom_call.1} parent=83 // pred_check_branch
                %548 = sbr.rel (0) target = $region99
              $region98: #{tpu_custom_call.1} parent=83 // pred_region
                loop: start=0, step=1, limit=1
                $region100: #{tpu_custom_call.1} parent=98 // loop_pre_header
                  _
                $region101: #{tpu_custom_call.1} parent=98 // loop_header
                  %s550 = sphi 0, %s554
                  %p551 = scmp.ge.s32.totalorder %s550, 1
                  %s555 = sphi %s514, %s514
                  %s556 = sphi %s512, %s512
                $region102: #{tpu_custom_call.1} parent=98 // loop_header_branch
                  %553 = sbr.rel (%p551) target = $region106
                $region103: #{tpu_custom_call.1} parent=98 // loop_body
                  _
                $region104: #{tpu_custom_call.1} parent=98 // loop_footer
                  %s554 = sadd.s32 1, %s550
                $region105: #{tpu_custom_call.1} parent=98 // loop_footer_branch
                  %549 = sbr.rel target = $region101
                $region106: #{tpu_custom_call.1} parent=98 // loop_exit
                  _
                %s558 = ssub.s32 16, 1
                loop: start=0, step=1, limit=1
                $region107: #{tpu_custom_call.1} parent=98 // loop_pre_header
                  _
                $region108: #{tpu_custom_call.1} parent=98 // loop_header
                  %s560 = sphi 0, %s564
                  %p561 = scmp.ge.s32.totalorder %s560, 1
                  %s565 = sphi %s514, %s514
                  %s566 = sphi %s512, %s512
                $region109: #{tpu_custom_call.1} parent=98 // loop_header_branch
                  %563 = sbr.rel (%p561) target = $region113
                $region110: #{tpu_custom_call.1} parent=98 // loop_body
                  %v567 = vld [vmem:[%s565] sm:%s558]
                  %568 = vst [vmem:[%s566] sm:%s558] %v567
                  %v569 = vld [vmem:[%s565 + $0x8] sm:%s558]
                  %570 = vst [vmem:[%s566 + $0x4] sm:%s558] %v569
                  %v571 = vld [vmem:[%s565 + $0x10] sm:%s558]
                  %572 = vst [vmem:[%s566 + $0x8] sm:%s558] %v571
                  %v573 = vld [vmem:[%s565 + $0x18] sm:%s558]
                  %574 = vst [vmem:[%s566 + $0xc] sm:%s558] %v573
                  %v575 = vld [vmem:[%s565 + $0x20] sm:%s558]
                  %576 = vst [vmem:[%s566 + $0x10] sm:%s558] %v575
                  %v577 = vld [vmem:[%s565 + $0x28] sm:%s558]
                  %578 = vst [vmem:[%s566 + $0x14] sm:%s558] %v577
                  %v579 = vld [vmem:[%s565 + $0x30] sm:%s558]
                  %580 = vst [vmem:[%s566 + $0x18] sm:%s558] %v579
                  %v581 = vld [vmem:[%s565 + $0x38] sm:%s558]
                  %582 = vst [vmem:[%s566 + $0x1c] sm:%s558] %v581
                $region111: #{tpu_custom_call.1} parent=98 // loop_footer
                  %s564 = sadd.s32 1, %s560
                $region112: #{tpu_custom_call.1} parent=98 // loop_footer_branch
                  %559 = sbr.rel target = $region108
                $region113: #{tpu_custom_call.1} parent=98 // loop_exit
                  _
              $region99: #{tpu_custom_call.1} parent=83 // pred_fallthru
                _
            $region84: #{tpu_custom_call.1} parent=79 // pred_fallthru
              _
            // Predicated region
            $region85: #{tpu_custom_call.1} parent=79 // pred_check
              _
            $region86: #{tpu_custom_call.1} parent=79 // pred_check_branch
              %520 = sbr.rel (0) target = $region88
            $region87: #{tpu_custom_call.1} parent=79 // pred_region
              %s522 = ssub.s32 16, 1
              loop: start=0, step=1, limit=1
              $region89: #{tpu_custom_call.1} parent=87 // loop_pre_header
                _
              $region90: #{tpu_custom_call.1} parent=87 // loop_header
                %s524 = sphi 0, %s528
                %p525 = scmp.ge.s32.totalorder %s524, 1
                %s529 = sphi %s514, %s514
                %s530 = sphi %s512, %s512
              $region91: #{tpu_custom_call.1} parent=87 // loop_header_branch
                %527 = sbr.rel (%p525) target = $region95
              $region92: #{tpu_custom_call.1} parent=87 // loop_body
                %v531 = vld [vmem:[%s529] sm:%s522]
                %532 = vst [vmem:[%s530] sm:%s522] %v531
                %v533 = vld [vmem:[%s529 + $0x8] sm:%s522]
                %534 = vst [vmem:[%s530 + $0x4] sm:%s522] %v533
                %v535 = vld [vmem:[%s529 + $0x10] sm:%s522]
                %536 = vst [vmem:[%s530 + $0x8] sm:%s522] %v535
                %v537 = vld [vmem:[%s529 + $0x18] sm:%s522]
                %538 = vst [vmem:[%s530 + $0xc] sm:%s522] %v537
                %v539 = vld [vmem:[%s529 + $0x20] sm:%s522]
                %540 = vst [vmem:[%s530 + $0x10] sm:%s522] %v539
                %v541 = vld [vmem:[%s529 + $0x28] sm:%s522]
                %542 = vst [vmem:[%s530 + $0x14] sm:%s522] %v541
                %v543 = vld [vmem:[%s529 + $0x30] sm:%s522]
                %544 = vst [vmem:[%s530 + $0x18] sm:%s522] %v543
                %v545 = vld [vmem:[%s529 + $0x38] sm:%s522]
                %546 = vst [vmem:[%s530 + $0x1c] sm:%s522] %v545
              $region93: #{tpu_custom_call.1} parent=87 // loop_footer
                %s528 = sadd.s32 1, %s524
              $region94: #{tpu_custom_call.1} parent=87 // loop_footer_branch
                %523 = sbr.rel target = $region90
              $region95: #{tpu_custom_call.1} parent=87 // loop_exit
                _
            $region88: #{tpu_custom_call.1} parent=79 // pred_fallthru
              _
          $region80: #{tpu_custom_call.1} parent=75 // pred_fallthru
            _
          %583 = vnop
        $region76: #{tpu_custom_call.1} parent=67 // pred_fallthru
          _
        // Predicated region
        $region114: #{tpu_custom_call.1} parent=67 // pred_check
          %p584 = pneg %p362
        $region115: #{tpu_custom_call.1} parent=67 // pred_check_branch
          %586 = sbr.rel (%p584) target = $region117
        $region116: #{tpu_custom_call.1} parent=67 // pred_region
          %p587 = scmp.lt.s32.totalorder %s34, 1
          %s588 = scalar_select %p587, %s34, 1
          %s589 = scalar_lea.vmem %s14, %s588
        $region117: #{tpu_custom_call.1} parent=67 // pred_fallthru
          _
        // Predicated region
        $region118: #{tpu_custom_call.1} parent=67 // pred_check
          %p590 = pneg %p388
        $region119: #{tpu_custom_call.1} parent=67 // pred_check_branch
          %592 = sbr.rel (%p590) target = $region121
        $region120: #{tpu_custom_call.1} parent=67 // pred_region
          %s593 = smul.u32 16, %s34
          %p594 = scmp.lt.s32.totalorder %s593, 31
          %s595 = scalar_select %p594, %s593, 31
          %s596 = smul.addr %s595, 4
          %s597 = scalar_lea.vmem %s15, %s596
          %s598 = smul.u32 16, %s34
        $region121: #{tpu_custom_call.1} parent=67 // pred_fallthru
          _
      $region68: #{tpu_custom_call.1} parent=5 // pred_fallthru
        _
      %p599 = scmp.le.s32.totalorder 1, %s26
      %p600 = scmp.lt.s32.totalorder %s26, 5
      %p601 = pnand %p599, %p600
      %p602 = pneg %p601
      // Predicated region
      $region122: #{tpu_custom_call.1} parent=5 // pred_check
        _
      $region123: #{tpu_custom_call.1} parent=5 // pred_check_branch
        %604 = sbr.rel (%p601) target = $region125
      $region124: #{tpu_custom_call.1} parent=5 // pred_region
        %s605 = ssub.s32 %s26, 1
        %s606 = sand.u32 %s329, 1
        %s607 = sand.u32 %s329, 1
        %s608 = smul.addr %s607, 32
        %s609 = scalar_lea.vmem [#allocation5], %s608
        // Predicated region
        $region126: #{tpu_custom_call.1} parent=124 // pred_check
          %p610 = pneg %p342
        $region127: #{tpu_custom_call.1} parent=124 // pred_check_branch
          %612 = sbr.rel (%p610) target = $region129
        $region128: #{tpu_custom_call.1} parent=124 // pred_region
          _
        $region129: #{tpu_custom_call.1} parent=124 // pred_fallthru
          _
        %p613 = scmp.lt.s32.totalorder %s35, 1
        %s614 = scalar_select %p613, %s35, 1
        %s615 = smul.addr %s614, 8
        %s616 = scalar_lea.vmem %s0, %s615
        %p617 = pneg %p64
        %p618 = pneg %p61
        %p619 = pneg %p85
        %p620 = pneg %p82
        %p621 = pneg %p106
        %p622 = pneg %p103
        %p623 = pneg %p127
        %p624 = pneg %p124
        %p625 = pneg %p148
        %p626 = pneg %p145
        %p627 = pneg %p169
        %p628 = pneg %p166
        %p629 = pneg %p190
        %p630 = pneg %p187
        %p631 = pneg %p211
        %p632 = pneg %p208
        %p633 = pneg %p232
        %p634 = pneg %p229
        %p635 = pneg %p253
        %p636 = pneg %p250
        %p637 = pneg %p274
        %p638 = pneg %p271
        %p639 = pneg %p295
        %p640 = pneg %p292
        %p641 = pneg %p316
        %p642 = pneg %p313
        %s643 = sand.u32 %s329, 1
        %s644 = sand.u32 %s329, 1
        %s645 = smul.addr %s644, 32
        %s646 = scalar_lea.vmem [#allocation5], %s645
        %p647 = pneg %p342
        %p648 = pneg %p339
        %p649 = scmp.lt.s32.totalorder %s36, 1
        %s650 = scalar_select %p649, %s36, 1
        %s651 = scalar_lea.vmem %s14, %s650
        %p652 = pneg %p368
        %p653 = pneg %p365
        %s654 = smul.u32 16, %s36
        %p655 = scmp.lt.s32.totalorder %s654, 31
        %s656 = scalar_select %p655, %s654, 31
        %s657 = smul.addr %s656, 4
        %s658 = scalar_lea.vmem %s15, %s657
        %p659 = pneg %p394
        %p660 = pneg %p391
        %p661 = pneg %p415
        %p662 = pneg %p412
        %p663 = pneg %p441
        %p664 = pneg %p438
        %s665 = sand.u32 %s428, 1
        %s666 = scalar_lea.sflag [#allocation7], %s665
        %s667 = sand.u32 %s428, 1
        %s668 = smul.addr %s667, 8
        %s669 = scalar_lea.vmem [#allocation6], %s668
        %p670 = scmp.lt.s32.totalorder %s35, 1
        %s671 = scalar_select %p670, %s35, 1
        %s672 = smul.addr %s671, 8
        %s673 = scalar_lea.vmem %s0, %s672
        %p674 = scmp.lt.s32.totalorder %s36, 1
        %s675 = scalar_select %p674, %s36, 1
        %s676 = scalar_lea.vmem %s14, %s675
        %s677 = smul.u32 16, %s36
        %p678 = scmp.lt.s32.totalorder %s677, 31
        %s679 = scalar_select %p678, %s677, 31
        %s680 = smul.addr %s679, 4
        %s681 = scalar_lea.vmem %s15, %s680
        %s682 = smul.u32 16, %s36
        %p684 = scmp.eq.s32.totalorder %s36, 0
        // Predicated region
        $region130: #{tpu_custom_call.1} parent=124 // pred_check
          %p685 = pneg %p684
        $region131: #{tpu_custom_call.1} parent=124 // pred_check_branch
          %687 = sbr.rel (%p685) target = $region133
        $region132: #{tpu_custom_call.1} parent=124 // pred_region
          %v688 = vld [vmem:[%s673] sm:$0xff]
          %v689 = vld [vmem:[%s1] sm:$0x1]
          %v690 = vld [vmem:[%s2] sm:$0x1]
          %vm691 = vcmask 523264
          %v692 = vsel %vm691, %v688, 0.0
          %693 = vadd.xlane.f32.xlu0 %v692
          %v694 = vpop.xlane.xlu0 %693
          %v695 = vrcp.pop 64.0
          %v696 = vmul.f32 64.0, %v695
          %v697 = vsub.f32 1.0, %v696
          %v698 = vmul.f32 %v695, %v697
          %v699 = vadd.f32 %v695, %v698
          %vm700 = vweird.f32 %v695
          %v701 = vsel %vm700, %v695, %v699
          %v702 = vmul.f32 %v694, %v701
          %v703 = vsub.f32 %v688, %v702
          %v704 = vmul.f32 %v703, %v703
          %v705 = vsel %vm691, %v704, 0.0
          %706 = vadd.xlane.f32.xlu0 %v705
          %v707 = vpop.xlane.xlu0 %706
          %v708 = vmul.f32 %v707, %v701
          %v709 = vadd.f32 %v708, 1e-05
          %v710 = vrsqrt.pop %v709
          %v711 = vmul.f32 %v710, %v709
          %v712 = vmul.f32 %v711, %v710
          %v713 = vmul.f32 0.5, %v712
          %v714 = vsub.f32 1.5, %v713
          %v715 = vmul.f32 %v710, %v714
          %vm716 = vweird.f32 %v709
          %vm717 = vweird.f32 %v710
          %vm718 = vmor %vm716, %vm717
          %v719 = vsel %vm718, %v710, %v715
          %v720 = vmul.f32 %v703, %v719
          %v722 = vperm.slane %v689, 0
          %v724 = vmul.f32 %v720, %v722
          %v726 = vperm.slane %v690, 0
          %v728 = vadd.f32 %v724, %v726
          %v729 = vpack.c.bf16 %v728, %v728
          %v730 = vld [vmem:[%s3] sm:$0xf]
          %v731 = vld [vmem:[%s3 + $0x4] sm:$0xf]
          %v732 = vld [vmem:[%s3 + $0x8] sm:$0xf]
          %v733 = vld [vmem:[%s3 + $0xc] sm:$0xf]
          %v734 = vld [vmem:[%s3 + $0x10] sm:$0xf]
          %v735 = vld [vmem:[%s3 + $0x14] sm:$0xf]
          %v736 = vld [vmem:[%s3 + $0x18] sm:$0xf]
          %v737 = vld [vmem:[%s3 + $0x1c] sm:$0xf]
          %v738 = vld [vmem:[%s4] sm:$0x1]
          %v740 = vperm.slane %v738, 0
          %v750 = vunpack.c.l.b16 %v730
          %v751 = vunpack.c.l.b16 %v731
          %v752 = vunpack.c.l.b16 %v732
          %v753 = vunpack.c.l.b16 %v733
          %v754 = vunpack.c.l.b16 %v734
          %v755 = vunpack.c.l.b16 %v735
          %v756 = vunpack.c.l.b16 %v736
          %v757 = vunpack.c.l.b16 %v737
          %v758 = vpack.c.b16 %v751, %v750
          %v759 = vpack.c.b16 %v753, %v752
          %v760 = vpack.c.b16 %v755, %v754
          %v761 = vpack.c.b16 %v757, %v756
          %v767 = vsel %vm691, %v729, 0
          %769 = vmatpush.bf16.msra.mxu0 0
          %770 = vmatpush.bf16.msra.mxu0 0
          %771 = vmatpush.bf16.msra.mxu0 0
          %772 = vmatpush.bf16.msra.mxu0 0
          %773 = vmatpush.bf16.msra.mxu0 %v761
          %774 = vmatpush.bf16.msra.mxu0 %v760
          %775 = vmatpush.bf16.msra.mxu0 %v759
          %776 = vmatpush.bf16.msra.mxu0 %v758
          %777 = vmatmul.bf16.gmra.mxu0 %v767
          %v778 = vpop.f32.mrf.mxu0
          %v779 = vadd.f32 %v740, %v778
          %v780 = vpop.f32.mrf.mxu0
          %781 = vdwg.mxu0
          %v782 = vld [vmem:[%s5] sm:$0xf]
          %v783 = vld [vmem:[%s5 + $0x4] sm:$0xf]
          %v784 = vld [vmem:[%s5 + $0x8] sm:$0xf]
          %v785 = vld [vmem:[%s5 + $0xc] sm:$0xf]
          %v786 = vld [vmem:[%s5 + $0x10] sm:$0xf]
          %v787 = vld [vmem:[%s5 + $0x14] sm:$0xf]
          %v788 = vld [vmem:[%s5 + $0x18] sm:$0xf]
          %v789 = vld [vmem:[%s5 + $0x1c] sm:$0xf]
          %v790 = vld [vmem:[%s6] sm:$0x1]
          %v792 = vperm.slane %v790, 0
          %v802 = vunpack.c.l.b16 %v782
          %v803 = vunpack.c.l.b16 %v783
          %v804 = vunpack.c.l.b16 %v784
          %v805 = vunpack.c.l.b16 %v785
          %v806 = vunpack.c.l.b16 %v786
          %v807 = vunpack.c.l.b16 %v787
          %v808 = vunpack.c.l.b16 %v788
          %v809 = vunpack.c.l.b16 %v789
          %v810 = vpack.c.b16 %v803, %v802
          %v811 = vpack.c.b16 %v805, %v804
          %v812 = vpack.c.b16 %v807, %v806
          %v813 = vpack.c.b16 %v809, %v808
          %818 = vmatpush.bf16.msra.mxu0 0
          %819 = vmatpush.bf16.msra.mxu0 0
          %820 = vmatpush.bf16.msra.mxu0 0
          %821 = vmatpush.bf16.msra.mxu0 0
          %822 = vmatpush.bf16.msra.mxu0 %v813
          %823 = vmatpush.bf16.msra.mxu0 %v812
          %824 = vmatpush.bf16.msra.mxu0 %v811
          %825 = vmatpush.bf16.msra.mxu0 %v810
          %826 = vmatmul.bf16.gmra.mxu0 %v767
          %v827 = vpop.f32.mrf.mxu0
          %v828 = vadd.f32 %v792, %v827
          %v829 = vpop.f32.mrf.mxu0
          %830 = vdwg.mxu0
          %v831 = vld [vmem:[%s7] sm:$0xf]
          %v832 = vld [vmem:[%s7 + $0x4] sm:$0xf]
          %v833 = vld [vmem:[%s7 + $0x8] sm:$0xf]
          %v834 = vld [vmem:[%s7 + $0xc] sm:$0xf]
          %v835 = vld [vmem:[%s7 + $0x10] sm:$0xf]
          %v836 = vld [vmem:[%s7 + $0x14] sm:$0xf]
          %v837 = vld [vmem:[%s7 + $0x18] sm:$0xf]
          %v838 = vld [vmem:[%s7 + $0x1c] sm:$0xf]
          %v839 = vld [vmem:[%s8] sm:$0x1]
          %v841 = vperm.slane %v839, 0
          %v851 = vunpack.c.l.b16 %v831
          %v852 = vunpack.c.l.b16 %v832
          %v853 = vunpack.c.l.b16 %v833
          %v854 = vunpack.c.l.b16 %v834
          %v855 = vunpack.c.l.b16 %v835
          %v856 = vunpack.c.l.b16 %v836
          %v857 = vunpack.c.l.b16 %v837
          %v858 = vunpack.c.l.b16 %v838
          %v859 = vpack.c.b16 %v852, %v851
          %v860 = vpack.c.b16 %v854, %v853
          %v861 = vpack.c.b16 %v856, %v855
          %v862 = vpack.c.b16 %v858, %v857
          %867 = vmatpush.bf16.msra.mxu0 0
          %868 = vmatpush.bf16.msra.mxu0 0
          %869 = vmatpush.bf16.msra.mxu0 0
          %870 = vmatpush.bf16.msra.mxu0 0
          %871 = vmatpush.bf16.msra.mxu0 %v862
          %872 = vmatpush.bf16.msra.mxu0 %v861
          %873 = vmatpush.bf16.msra.mxu0 %v860
          %874 = vmatpush.bf16.msra.mxu0 %v859
          %875 = vmatmul.bf16.gmra.mxu0 %v767
          %v876 = vpop.f32.mrf.mxu0
          %v877 = vadd.f32 %v841, %v876
          %v878 = vpop.f32.mrf.mxu0
          %879 = vdwg.mxu0
          %v880 = vpack.c.bf16 %v779, %v779
          %v881 = vpack.c.bf16 %v828, %v828
          %vm882 = vcmask 130048
          %v884 = vsel %vm882, %v880, 0
          %v887 = vsel %vm882, %v881, 0
          %889 = vmatpush.bf16.xpose.msra.mxu0 0
          %890 = vmatpush.bf16.xpose.msra.mxu0 0
          %891 = vmatpush.bf16.xpose.msra.mxu0 0
          %892 = vmatpush.bf16.xpose.msra.mxu0 0
          %893 = vmatpush.bf16.xpose.msra.mxu0 0
          %894 = vmatpush.bf16.xpose.msra.mxu0 0
          %895 = vmatpush.bf16.xpose.msra.mxu0 0
          %896 = vmatpush.bf16.xpose.msra.mxu0 %v887
          %897 = vmatmul.bf16.gmra.mxu0 %v884
          %v898 = vpop.f32.mrf.mxu0
          %v899 = vadd.f32 0.0, %v898
          %v900 = vpop.f32.mrf.mxu0
          %901 = vdwg.mxu0
          %vm902 = vcmask 64512
          %v903 = vsel %vm902, %v899, -inf
          %904 = vmax.xlane.f32.xlu0 %v903
          %v905 = vpop.xlane.xlu0 %904
          %v906 = vsub.f32 %v899, %v905
          %v907 = vmul.f32 %v906, 1.442695
          %v908 = vpow.pop %v907
          %v909 = vsel %vm902, %v908, 0.0
          %910 = vadd.xlane.f32.xlu0 %v909
          %v911 = vpop.xlane.xlu0 %910
          %v912 = vmul.f32 %v911, 8.0
          %v913 = vrcp.pop %v912
          %v914 = vmul.f32 %v908, %v913
          %v915 = vpack.c.bf16 %v914, %v914
          %v916 = vpack.c.bf16 %v877, %v877
          %v918 = vsel %vm902, %v915, 0
          %vm920 = vcmask 1043456
          %v922 = vsel %vm920, %v916, 0
          %924 = vmatpush.bf16.msra.mxu0 0
          %925 = vmatpush.bf16.msra.mxu0 0
          %926 = vmatpush.bf16.msra.mxu0 0
          %927 = vmatpush.bf16.msra.mxu0 0
          %928 = vmatpush.bf16.msra.mxu0 0
          %929 = vmatpush.bf16.msra.mxu0 0
          %930 = vmatpush.bf16.msra.mxu0 0
          %931 = vmatpush.bf16.msra.mxu0 %v922
          %932 = vmatmul.bf16.gmra.mxu0 %v918
          %v933 = vpop.f32.mrf.mxu0
          %v934 = vadd.f32 0.0, %v933
          %v935 = vpop.f32.mrf.mxu0
          %936 = vdwg.mxu0
          %v937 = vpack.c.bf16 %v934, %v934
          %v938 = vld [vmem:[%s9] sm:$0xf]
          %v939 = vld [vmem:[%s9 + $0x4] sm:$0xf]
          %s940 = scalar_lea.vmem %s3, 32
          %v941 = vld [vmem:[%s940] sm:$0xf]
          %v942 = vld [vmem:[%s940 + $0x4] sm:$0xf]
          %v943 = vld [vmem:[%s940 + $0x8] sm:$0xf]
          %v944 = vld [vmem:[%s940 + $0xc] sm:$0xf]
          %v945 = vld [vmem:[%s940 + $0x10] sm:$0xf]
          %v946 = vld [vmem:[%s940 + $0x14] sm:$0xf]
          %v947 = vld [vmem:[%s940 + $0x18] sm:$0xf]
          %v948 = vld [vmem:[%s940 + $0x1c] sm:$0xf]
          %s949 = scalar_lea.vmem %s4, 1
          %v950 = vld [vmem:[%s949] sm:$0x1]
          %v952 = vperm.slane %v950, 0
          %v962 = vunpack.c.l.b16 %v941
          %v963 = vunpack.c.l.b16 %v942
          %v964 = vunpack.c.l.b16 %v943
          %v965 = vunpack.c.l.b16 %v944
          %v966 = vunpack.c.l.b16 %v945
          %v967 = vunpack.c.l.b16 %v946
          %v968 = vunpack.c.l.b16 %v947
          %v969 = vunpack.c.l.b16 %v948
          %v970 = vpack.c.b16 %v963, %v962
          %v971 = vpack.c.b16 %v965, %v964
          %v972 = vpack.c.b16 %v967, %v966
          %v973 = vpack.c.b16 %v969, %v968
          %978 = vmatpush.bf16.msra.mxu0 0
          %979 = vmatpush.bf16.msra.mxu0 0
          %980 = vmatpush.bf16.msra.mxu0 0
          %981 = vmatpush.bf16.msra.mxu0 0
          %982 = vmatpush.bf16.msra.mxu0 %v973
          %983 = vmatpush.bf16.msra.mxu0 %v972
          %984 = vmatpush.bf16.msra.mxu0 %v971
          %985 = vmatpush.bf16.msra.mxu0 %v970
          %986 = vmatmul.bf16.gmra.mxu0 %v767
          %v987 = vpop.f32.mrf.mxu0
          %v988 = vadd.f32 %v952, %v987
          %v989 = vpop.f32.mrf.mxu0
          %990 = vdwg.mxu0
          %s991 = scalar_lea.vmem %s5, 32
          %v992 = vld [vmem:[%s991] sm:$0xf]
          %v993 = vld [vmem:[%s991 + $0x4] sm:$0xf]
          %v994 = vld [vmem:[%s991 + $0x8] sm:$0xf]
          %v995 = vld [vmem:[%s991 + $0xc] sm:$0xf]
          %v996 = vld [vmem:[%s991 + $0x10] sm:$0xf]
          %v997 = vld [vmem:[%s991 + $0x14] sm:$0xf]
          %v998 = vld [vmem:[%s991 + $0x18] sm:$0xf]
          %v999 = vld [vmem:[%s991 + $0x1c] sm:$0xf]
          %s1000 = scalar_lea.vmem %s6, 1
          %v1001 = vld [vmem:[%s1000] sm:$0x1]
          %v1003 = vperm.slane %v1001, 0
          %v1013 = vunpack.c.l.b16 %v992
          %v1014 = vunpack.c.l.b16 %v993
          %v1015 = vunpack.c.l.b16 %v994
          %v1016 = vunpack.c.l.b16 %v995
          %v1017 = vunpack.c.l.b16 %v996
          %v1018 = vunpack.c.l.b16 %v997
          %v1019 = vunpack.c.l.b16 %v998
          %v1020 = vunpack.c.l.b16 %v999
          %v1021 = vpack.c.b16 %v1014, %v1013
          %v1022 = vpack.c.b16 %v1016, %v1015
          %v1023 = vpack.c.b16 %v1018, %v1017
          %v1024 = vpack.c.b16 %v1020, %v1019
          %1029 = vmatpush.bf16.msra.mxu0 0
          %1030 = vmatpush.bf16.msra.mxu0 0
          %1031 = vmatpush.bf16.msra.mxu0 0
          %1032 = vmatpush.bf16.msra.mxu0 0
          %1033 = vmatpush.bf16.msra.mxu0 %v1024
          %1034 = vmatpush.bf16.msra.mxu0 %v1023
          %1035 = vmatpush.bf16.msra.mxu0 %v1022
          %1036 = vmatpush.bf16.msra.mxu0 %v1021
          %1037 = vmatmul.bf16.gmra.mxu0 %v767
          %v1038 = vpop.f32.mrf.mxu0
          %v1039 = vadd.f32 %v1003, %v1038
          %v1040 = vpop.f32.mrf.mxu0
          %1041 = vdwg.mxu0
          %s1042 = scalar_lea.vmem %s7, 32
          %v1043 = vld [vmem:[%s1042] sm:$0xf]
          %v1044 = vld [vmem:[%s1042 + $0x4] sm:$0xf]
          %v1045 = vld [vmem:[%s1042 + $0x8] sm:$0xf]
          %v1046 = vld [vmem:[%s1042 + $0xc] sm:$0xf]
          %v1047 = vld [vmem:[%s1042 + $0x10] sm:$0xf]
          %v1048 = vld [vmem:[%s1042 + $0x14] sm:$0xf]
          %v1049 = vld [vmem:[%s1042 + $0x18] sm:$0xf]
          %v1050 = vld [vmem:[%s1042 + $0x1c] sm:$0xf]
          %s1051 = scalar_lea.vmem %s8, 1
          %v1052 = vld [vmem:[%s1051] sm:$0x1]
          %v1054 = vperm.slane %v1052, 0
          %v1064 = vunpack.c.l.b16 %v1043
          %v1065 = vunpack.c.l.b16 %v1044
          %v1066 = vunpack.c.l.b16 %v1045
          %v1067 = vunpack.c.l.b16 %v1046
          %v1068 = vunpack.c.l.b16 %v1047
          %v1069 = vunpack.c.l.b16 %v1048
          %v1070 = vunpack.c.l.b16 %v1049
          %v1071 = vunpack.c.l.b16 %v1050
          %v1072 = vpack.c.b16 %v1065, %v1064
          %v1073 = vpack.c.b16 %v1067, %v1066
          %v1074 = vpack.c.b16 %v1069, %v1068
          %v1075 = vpack.c.b16 %v1071, %v1070
          %1080 = vmatpush.bf16.msra.mxu0 0
          %1081 = vmatpush.bf16.msra.mxu0 0
          %1082 = vmatpush.bf16.msra.mxu0 0
          %1083 = vmatpush.bf16.msra.mxu0 0
          %1084 = vmatpush.bf16.msra.mxu0 %v1075
          %1085 = vmatpush.bf16.msra.mxu0 %v1074
          %1086 = vmatpush.bf16.msra.mxu0 %v1073
          %1087 = vmatpush.bf16.msra.mxu0 %v1072
          %1088 = vmatmul.bf16.gmra.mxu0 %v767
          %v1089 = vpop.f32.mrf.mxu0
          %v1090 = vadd.f32 %v1054, %v1089
          %v1091 = vpop.f32.mrf.mxu0
          %1092 = vdwg.mxu0
          %v1093 = vpack.c.bf16 %v988, %v988
          %v1094 = vpack.c.bf16 %v1039, %v1039
          %v1096 = vsel %vm882, %v1093, 0
          %v1099 = vsel %vm882, %v1094, 0
          %1101 = vmatpush.bf16.xpose.msra.mxu0 0
          %1102 = vmatpush.bf16.xpose.msra.mxu0 0
          %1103 = vmatpush.bf16.xpose.msra.mxu0 0
          %1104 = vmatpush.bf16.xpose.msra.mxu0 0
          %1105 = vmatpush.bf16.xpose.msra.mxu0 0
          %1106 = vmatpush.bf16.xpose.msra.mxu0 0
          %1107 = vmatpush.bf16.xpose.msra.mxu0 0
          %1108 = vmatpush.bf16.xpose.msra.mxu0 %v1099
          %1109 = vmatmul.bf16.gmra.mxu0 %v1096
          %v1110 = vpop.f32.mrf.mxu0
          %v1111 = vadd.f32 0.0, %v1110
          %v1112 = vpop.f32.mrf.mxu0
          %1113 = vdwg.mxu0
          %v1114 = vsel %vm902, %v1111, -inf
          %1115 = vmax.xlane.f32.xlu0 %v1114
          %v1116 = vpop.xlane.xlu0 %1115
          %v1117 = vsub.f32 %v1111, %v1116
          %v1118 = vmul.f32 %v1117, 1.442695
          %v1119 = vpow.pop %v1118
          %v1120 = vsel %vm902, %v1119, 0.0
          %1121 = vadd.xlane.f32.xlu0 %v1120
          %v1122 = vpop.xlane.xlu0 %1121
          %v1123 = vmul.f32 %v1122, 8.0
          %v1124 = vrcp.pop %v1123
          %v1125 = vmul.f32 %v1119, %v1124
          %v1126 = vpack.c.bf16 %v1125, %v1125
          %v1127 = vpack.c.bf16 %v1090, %v1090
          %v1129 = vsel %vm902, %v1126, 0
          %v1132 = vsel %vm920, %v1127, 0
          %1134 = vmatpush.bf16.msra.mxu0 0
          %1135 = vmatpush.bf16.msra.mxu0 0
          %1136 = vmatpush.bf16.msra.mxu0 0
          %1137 = vmatpush.bf16.msra.mxu0 0
          %1138 = vmatpush.bf16.msra.mxu0 0
          %1139 = vmatpush.bf16.msra.mxu0 0
          %1140 = vmatpush.bf16.msra.mxu0 0
          %1141 = vmatpush.bf16.msra.mxu0 %v1132
          %1142 = vmatmul.bf16.gmra.mxu0 %v1129
          %v1143 = vpop.f32.mrf.mxu0
          %v1144 = vadd.f32 0.0, %v1143
          %v1145 = vpop.f32.mrf.mxu0
          %1146 = vdwg.mxu0
          %v1147 = vpack.c.bf16 %v1144, %v1144
          %s1148 = scalar_lea.vmem %s9, 8
          %v1149 = vld [vmem:[%s1148] sm:$0xf]
          %v1150 = vld [vmem:[%s1148 + $0x4] sm:$0xf]
          %v1153 = vunpack.c.l.b16 %v1149
          %v1154 = vunpack.c.l.b16 %v1150
          %v1155 = vpack.c.b16 %v1154, %v1153
          %v1158 = vsel %vm882, %v1147, 0
          %1160 = vmatpush.bf16.msra.mxu0 0
          %1161 = vmatpush.bf16.msra.mxu0 0
          %1162 = vmatpush.bf16.msra.mxu0 0
          %1163 = vmatpush.bf16.msra.mxu0 0
          %1164 = vmatpush.bf16.msra.mxu0 0
          %1165 = vmatpush.bf16.msra.mxu0 0
          %1166 = vmatpush.bf16.msra.mxu0 0
          %1167 = vmatpush.bf16.msra.mxu0 %v1155
          %1168 = vmatmul.bf16.gmra.mxu0 %v1158
          %v1169 = vpop.f32.mrf.mxu0
          %v1170 = vadd.f32 0.0, %v1169
          %v1171 = vpop.f32.mrf.mxu0
          %1172 = vdwg.mxu0
          %v1175 = vunpack.c.l.b16 %v938
          %v1176 = vunpack.c.l.b16 %v939
          %v1177 = vpack.c.b16 %v1176, %v1175
          %v1180 = vsel %vm882, %v937, 0
          %1182 = vmatpush.bf16.msra.mxu0 0
          %1183 = vmatpush.bf16.msra.mxu0 0
          %1184 = vmatpush.bf16.msra.mxu0 0
          %1185 = vmatpush.bf16.msra.mxu0 0
          %1186 = vmatpush.bf16.msra.mxu0 0
          %1187 = vmatpush.bf16.msra.mxu0 0
          %1188 = vmatpush.bf16.msra.mxu0 0
          %1189 = vmatpush.bf16.msra.mxu0 %v1177
          %1190 = vmatmul.bf16.gmra.mxu0 %v1180
          %v1191 = vpop.f32.mrf.mxu0
          %v1192 = vadd.f32 %v1170, %v1191
          %v1193 = vpop.f32.mrf.mxu0
          %1194 = vdwg.mxu0
          %s1195 = scalar_lea.vmem %s3, 64
          %v1196 = vld [vmem:[%s1195] sm:$0xf]
          %v1197 = vld [vmem:[%s1195 + $0x4] sm:$0xf]
          %v1198 = vld [vmem:[%s1195 + $0x8] sm:$0xf]
          %v1199 = vld [vmem:[%s1195 + $0xc] sm:$0xf]
          %v1200 = vld [vmem:[%s1195 + $0x10] sm:$0xf]
          %v1201 = vld [vmem:[%s1195 + $0x14] sm:$0xf]
          %v1202 = vld [vmem:[%s1195 + $0x18] sm:$0xf]
          %v1203 = vld [vmem:[%s1195 + $0x1c] sm:$0xf]
          %s1204 = scalar_lea.vmem %s4, 2
          %v1205 = vld [vmem:[%s1204] sm:$0x1]
          %v1207 = vperm.slane %v1205, 0
          %v1217 = vunpack.c.l.b16 %v1196
          %v1218 = vunpack.c.l.b16 %v1197
          %v1219 = vunpack.c.l.b16 %v1198
          %v1220 = vunpack.c.l.b16 %v1199
          %v1221 = vunpack.c.l.b16 %v1200
          %v1222 = vunpack.c.l.b16 %v1201
          %v1223 = vunpack.c.l.b16 %v1202
          %v1224 = vunpack.c.l.b16 %v1203
          %v1225 = vpack.c.b16 %v1218, %v1217
          %v1226 = vpack.c.b16 %v1220, %v1219
          %v1227 = vpack.c.b16 %v1222, %v1221
          %v1228 = vpack.c.b16 %v1224, %v1223
          %1233 = vmatpush.bf16.msra.mxu0 0
          %1234 = vmatpush.bf16.msra.mxu0 0
          %1235 = vmatpush.bf16.msra.mxu0 0
          %1236 = vmatpush.bf16.msra.mxu0 0
          %1237 = vmatpush.bf16.msra.mxu0 %v1228
          %1238 = vmatpush.bf16.msra.mxu0 %v1227
          %1239 = vmatpush.bf16.msra.mxu0 %v1226
          %1240 = vmatpush.bf16.msra.mxu0 %v1225
          %1241 = vmatmul.bf16.gmra.mxu0 %v767
          %v1242 = vpop.f32.mrf.mxu0
          %v1243 = vadd.f32 %v1207, %v1242
          %v1244 = vpop.f32.mrf.mxu0
          %1245 = vdwg.mxu0
          %s1246 = scalar_lea.vmem %s5, 64
          %v1247 = vld [vmem:[%s1246] sm:$0xf]
          %v1248 = vld [vmem:[%s1246 + $0x4] sm:$0xf]
          %v1249 = vld [vmem:[%s1246 + $0x8] sm:$0xf]
          %v1250 = vld [vmem:[%s1246 + $0xc] sm:$0xf]
          %v1251 = vld [vmem:[%s1246 + $0x10] sm:$0xf]
          %v1252 = vld [vmem:[%s1246 + $0x14] sm:$0xf]
          %v1253 = vld [vmem:[%s1246 + $0x18] sm:$0xf]
          %v1254 = vld [vmem:[%s1246 + $0x1c] sm:$0xf]
          %s1255 = scalar_lea.vmem %s6, 2
          %v1256 = vld [vmem:[%s1255] sm:$0x1]
          %v1258 = vperm.slane %v1256, 0
          %v1268 = vunpack.c.l.b16 %v1247
          %v1269 = vunpack.c.l.b16 %v1248
          %v1270 = vunpack.c.l.b16 %v1249
          %v1271 = vunpack.c.l.b16 %v1250
          %v1272 = vunpack.c.l.b16 %v1251
          %v1273 = vunpack.c.l.b16 %v1252
          %v1274 = vunpack.c.l.b16 %v1253
          %v1275 = vunpack.c.l.b16 %v1254
          %v1276 = vpack.c.b16 %v1269, %v1268
          %v1277 = vpack.c.b16 %v1271, %v1270
          %v1278 = vpack.c.b16 %v1273, %v1272
          %v1279 = vpack.c.b16 %v1275, %v1274
          %1284 = vmatpush.bf16.msra.mxu0 0
          %1285 = vmatpush.bf16.msra.mxu0 0
          %1286 = vmatpush.bf16.msra.mxu0 0
          %1287 = vmatpush.bf16.msra.mxu0 0
          %1288 = vmatpush.bf16.msra.mxu0 %v1279
          %1289 = vmatpush.bf16.msra.mxu0 %v1278
          %1290 = vmatpush.bf16.msra.mxu0 %v1277
          %1291 = vmatpush.bf16.msra.mxu0 %v1276
          %1292 = vmatmul.bf16.gmra.mxu0 %v767
          %v1293 = vpop.f32.mrf.mxu0
          %v1294 = vadd.f32 %v1258, %v1293
          %v1295 = vpop.f32.mrf.mxu0
          %1296 = vdwg.mxu0
          %s1297 = scalar_lea.vmem %s7, 64
          %v1298 = vld [vmem:[%s1297] sm:$0xf]
          %v1299 = vld [vmem:[%s1297 + $0x4] sm:$0xf]
          %v1300 = vld [vmem:[%s1297 + $0x8] sm:$0xf]
          %v1301 = vld [vmem:[%s1297 + $0xc] sm:$0xf]
          %v1302 = vld [vmem:[%s1297 + $0x10] sm:$0xf]
          %v1303 = vld [vmem:[%s1297 + $0x14] sm:$0xf]
          %v1304 = vld [vmem:[%s1297 + $0x18] sm:$0xf]
          %v1305 = vld [vmem:[%s1297 + $0x1c] sm:$0xf]
          %s1306 = scalar_lea.vmem %s8, 2
          %v1307 = vld [vmem:[%s1306] sm:$0x1]
          %v1309 = vperm.slane %v1307, 0
          %v1319 = vunpack.c.l.b16 %v1298
          %v1320 = vunpack.c.l.b16 %v1299
          %v1321 = vunpack.c.l.b16 %v1300
          %v1322 = vunpack.c.l.b16 %v1301
          %v1323 = vunpack.c.l.b16 %v1302
          %v1324 = vunpack.c.l.b16 %v1303
          %v1325 = vunpack.c.l.b16 %v1304
          %v1326 = vunpack.c.l.b16 %v1305
          %v1327 = vpack.c.b16 %v1320, %v1319
          %v1328 = vpack.c.b16 %v1322, %v1321
          %v1329 = vpack.c.b16 %v1324, %v1323
          %v1330 = vpack.c.b16 %v1326, %v1325
          %1335 = vmatpush.bf16.msra.mxu0 0
          %1336 = vmatpush.bf16.msra.mxu0 0
          %1337 = vmatpush.bf16.msra.mxu0 0
          %1338 = vmatpush.bf16.msra.mxu0 0
          %1339 = vmatpush.bf16.msra.mxu0 %v1330
          %1340 = vmatpush.bf16.msra.mxu0 %v1329
          %1341 = vmatpush.bf16.msra.mxu0 %v1328
          %1342 = vmatpush.bf16.msra.mxu0 %v1327
          %1343 = vmatmul.bf16.gmra.mxu0 %v767
          %v1344 = vpop.f32.mrf.mxu0
          %v1345 = vadd.f32 %v1309, %v1344
          %v1346 = vpop.f32.mrf.mxu0
          %1347 = vdwg.mxu0
          %v1348 = vpack.c.bf16 %v1243, %v1243
          %v1349 = vpack.c.bf16 %v1294, %v1294
          %v1351 = vsel %vm882, %v1348, 0
          %v1354 = vsel %vm882, %v1349, 0
          %1356 = vmatpush.bf16.xpose.msra.mxu0 0
          %1357 = vmatpush.bf16.xpose.msra.mxu0 0
          %1358 = vmatpush.bf16.xpose.msra.mxu0 0
          %1359 = vmatpush.bf16.xpose.msra.mxu0 0
          %1360 = vmatpush.bf16.xpose.msra.mxu0 0
          %1361 = vmatpush.bf16.xpose.msra.mxu0 0
          %1362 = vmatpush.bf16.xpose.msra.mxu0 0
          %1363 = vmatpush.bf16.xpose.msra.mxu0 %v1354
          %1364 = vmatmul.bf16.gmra.mxu0 %v1351
          %v1365 = vpop.f32.mrf.mxu0
          %v1366 = vadd.f32 0.0, %v1365
          %v1367 = vpop.f32.mrf.mxu0
          %1368 = vdwg.mxu0
          %v1369 = vsel %vm902, %v1366, -inf
          %1370 = vmax.xlane.f32.xlu0 %v1369
          %v1371 = vpop.xlane.xlu0 %1370
          %v1372 = vsub.f32 %v1366, %v1371
          %v1373 = vmul.f32 %v1372, 1.442695
          %v1374 = vpow.pop %v1373
          %v1375 = vsel %vm902, %v1374, 0.0
          %1376 = vadd.xlane.f32.xlu0 %v1375
          %v1377 = vpop.xlane.xlu0 %1376
          %v1378 = vmul.f32 %v1377, 8.0
          %v1379 = vrcp.pop %v1378
          %v1380 = vmul.f32 %v1374, %v1379
          %v1381 = vpack.c.bf16 %v1380, %v1380
          %v1382 = vpack.c.bf16 %v1345, %v1345
          %v1384 = vsel %vm902, %v1381, 0
          %v1387 = vsel %vm920, %v1382, 0
          %1389 = vmatpush.bf16.msra.mxu0 0
          %1390 = vmatpush.bf16.msra.mxu0 0
          %1391 = vmatpush.bf16.msra.mxu0 0
          %1392 = vmatpush.bf16.msra.mxu0 0
          %1393 = vmatpush.bf16.msra.mxu0 0
          %1394 = vmatpush.bf16.msra.mxu0 0
          %1395 = vmatpush.bf16.msra.mxu0 0
          %1396 = vmatpush.bf16.msra.mxu0 %v1387
          %1397 = vmatmul.bf16.gmra.mxu0 %v1384
          %v1398 = vpop.f32.mrf.mxu0
          %v1399 = vadd.f32 0.0, %v1398
          %v1400 = vpop.f32.mrf.mxu0
          %1401 = vdwg.mxu0
          %v1402 = vpack.c.bf16 %v1399, %v1399
          %s1403 = scalar_lea.vmem %s9, 16
          %v1404 = vld [vmem:[%s1403] sm:$0xf]
          %v1405 = vld [vmem:[%s1403 + $0x4] sm:$0xf]
          %v1408 = vunpack.c.l.b16 %v1404
          %v1409 = vunpack.c.l.b16 %v1405
          %v1410 = vpack.c.b16 %v1409, %v1408
          %v1413 = vsel %vm882, %v1402, 0
          %1415 = vmatpush.bf16.msra.mxu0 0
          %1416 = vmatpush.bf16.msra.mxu0 0
          %1417 = vmatpush.bf16.msra.mxu0 0
          %1418 = vmatpush.bf16.msra.mxu0 0
          %1419 = vmatpush.bf16.msra.mxu0 0
          %1420 = vmatpush.bf16.msra.mxu0 0
          %1421 = vmatpush.bf16.msra.mxu0 0
          %1422 = vmatpush.bf16.msra.mxu0 %v1410
          %1423 = vmatmul.bf16.gmra.mxu0 %v1413
          %v1424 = vpop.f32.mrf.mxu0
          %v1425 = vadd.f32 0.0, %v1424
          %v1426 = vpop.f32.mrf.mxu0
          %1427 = vdwg.mxu0
          %v1428 = vadd.f32 %v1192, %v1425
          %s1429 = scalar_lea.vmem %s3, 96
          %v1430 = vld [vmem:[%s1429] sm:$0xf]
          %v1431 = vld [vmem:[%s1429 + $0x4] sm:$0xf]
          %v1432 = vld [vmem:[%s1429 + $0x8] sm:$0xf]
          %v1433 = vld [vmem:[%s1429 + $0xc] sm:$0xf]
          %v1434 = vld [vmem:[%s1429 + $0x10] sm:$0xf]
          %v1435 = vld [vmem:[%s1429 + $0x14] sm:$0xf]
          %v1436 = vld [vmem:[%s1429 + $0x18] sm:$0xf]
          %v1437 = vld [vmem:[%s1429 + $0x1c] sm:$0xf]
          %s1438 = scalar_lea.vmem %s4, 3
          %v1439 = vld [vmem:[%s1438] sm:$0x1]
          %v1441 = vperm.slane %v1439, 0
          %v1451 = vunpack.c.l.b16 %v1430
          %v1452 = vunpack.c.l.b16 %v1431
          %v1453 = vunpack.c.l.b16 %v1432
          %v1454 = vunpack.c.l.b16 %v1433
          %v1455 = vunpack.c.l.b16 %v1434
          %v1456 = vunpack.c.l.b16 %v1435
          %v1457 = vunpack.c.l.b16 %v1436
          %v1458 = vunpack.c.l.b16 %v1437
          %v1459 = vpack.c.b16 %v1452, %v1451
          %v1460 = vpack.c.b16 %v1454, %v1453
          %v1461 = vpack.c.b16 %v1456, %v1455
          %v1462 = vpack.c.b16 %v1458, %v1457
          %1467 = vmatpush.bf16.msra.mxu0 0
          %1468 = vmatpush.bf16.msra.mxu0 0
          %1469 = vmatpush.bf16.msra.mxu0 0
          %1470 = vmatpush.bf16.msra.mxu0 0
          %1471 = vmatpush.bf16.msra.mxu0 %v1462
          %1472 = vmatpush.bf16.msra.mxu0 %v1461
          %1473 = vmatpush.bf16.msra.mxu0 %v1460
          %1474 = vmatpush.bf16.msra.mxu0 %v1459
          %1475 = vmatmul.bf16.gmra.mxu0 %v767
          %v1476 = vpop.f32.mrf.mxu0
          %v1477 = vadd.f32 %v1441, %v1476
          %v1478 = vpop.f32.mrf.mxu0
          %1479 = vdwg.mxu0
          %s1480 = scalar_lea.vmem %s5, 96
          %v1481 = vld [vmem:[%s1480] sm:$0xf]
          %v1482 = vld [vmem:[%s1480 + $0x4] sm:$0xf]
          %v1483 = vld [vmem:[%s1480 + $0x8] sm:$0xf]
          %v1484 = vld [vmem:[%s1480 + $0xc] sm:$0xf]
          %v1485 = vld [vmem:[%s1480 + $0x10] sm:$0xf]
          %v1486 = vld [vmem:[%s1480 + $0x14] sm:$0xf]
          %v1487 = vld [vmem:[%s1480 + $0x18] sm:$0xf]
          %v1488 = vld [vmem:[%s1480 + $0x1c] sm:$0xf]
          %s1489 = scalar_lea.vmem %s6, 3
          %v1490 = vld [vmem:[%s1489] sm:$0x1]
          %v1492 = vperm.slane %v1490, 0
          %v1502 = vunpack.c.l.b16 %v1481
          %v1503 = vunpack.c.l.b16 %v1482
          %v1504 = vunpack.c.l.b16 %v1483
          %v1505 = vunpack.c.l.b16 %v1484
          %v1506 = vunpack.c.l.b16 %v1485
          %v1507 = vunpack.c.l.b16 %v1486
          %v1508 = vunpack.c.l.b16 %v1487
          %v1509 = vunpack.c.l.b16 %v1488
          %v1510 = vpack.c.b16 %v1503, %v1502
          %v1511 = vpack.c.b16 %v1505, %v1504
          %v1512 = vpack.c.b16 %v1507, %v1506
          %v1513 = vpack.c.b16 %v1509, %v1508
          %1518 = vmatpush.bf16.msra.mxu0 0
          %1519 = vmatpush.bf16.msra.mxu0 0
          %1520 = vmatpush.bf16.msra.mxu0 0
          %1521 = vmatpush.bf16.msra.mxu0 0
          %1522 = vmatpush.bf16.msra.mxu0 %v1513
          %1523 = vmatpush.bf16.msra.mxu0 %v1512
          %1524 = vmatpush.bf16.msra.mxu0 %v1511
          %1525 = vmatpush.bf16.msra.mxu0 %v1510
          %1526 = vmatmul.bf16.gmra.mxu0 %v767
          %v1527 = vpop.f32.mrf.mxu0
          %v1528 = vadd.f32 %v1492, %v1527
          %v1529 = vpop.f32.mrf.mxu0
          %1530 = vdwg.mxu0
          %s1531 = scalar_lea.vmem %s7, 96
          %v1532 = vld [vmem:[%s1531] sm:$0xf]
          %v1533 = vld [vmem:[%s1531 + $0x4] sm:$0xf]
          %v1534 = vld [vmem:[%s1531 + $0x8] sm:$0xf]
          %v1535 = vld [vmem:[%s1531 + $0xc] sm:$0xf]
          %v1536 = vld [vmem:[%s1531 + $0x10] sm:$0xf]
          %v1537 = vld [vmem:[%s1531 + $0x14] sm:$0xf]
          %v1538 = vld [vmem:[%s1531 + $0x18] sm:$0xf]
          %v1539 = vld [vmem:[%s1531 + $0x1c] sm:$0xf]
          %s1540 = scalar_lea.vmem %s8, 3
          %v1541 = vld [vmem:[%s1540] sm:$0x1]
          %v1543 = vperm.slane %v1541, 0
          %v1553 = vunpack.c.l.b16 %v1532
          %v1554 = vunpack.c.l.b16 %v1533
          %v1555 = vunpack.c.l.b16 %v1534
          %v1556 = vunpack.c.l.b16 %v1535
          %v1557 = vunpack.c.l.b16 %v1536
          %v1558 = vunpack.c.l.b16 %v1537
          %v1559 = vunpack.c.l.b16 %v1538
          %v1560 = vunpack.c.l.b16 %v1539
          %v1561 = vpack.c.b16 %v1554, %v1553
          %v1562 = vpack.c.b16 %v1556, %v1555
          %v1563 = vpack.c.b16 %v1558, %v1557
          %v1564 = vpack.c.b16 %v1560, %v1559
          %1569 = vmatpush.bf16.msra.mxu0 0
          %1570 = vmatpush.bf16.msra.mxu0 0
          %1571 = vmatpush.bf16.msra.mxu0 0
          %1572 = vmatpush.bf16.msra.mxu0 0
          %1573 = vmatpush.bf16.msra.mxu0 %v1564
          %1574 = vmatpush.bf16.msra.mxu0 %v1563
          %1575 = vmatpush.bf16.msra.mxu0 %v1562
          %1576 = vmatpush.bf16.msra.mxu0 %v1561
          %1577 = vmatmul.bf16.gmra.mxu0 %v767
          %v1578 = vpop.f32.mrf.mxu0
          %v1579 = vadd.f32 %v1543, %v1578
          %v1580 = vpop.f32.mrf.mxu0
          %1581 = vdwg.mxu0
          %v1582 = vpack.c.bf16 %v1477, %v1477
          %v1583 = vpack.c.bf16 %v1528, %v1528
          %v1585 = vsel %vm882, %v1582, 0
          %v1588 = vsel %vm882, %v1583, 0
          %1590 = vmatpush.bf16.xpose.msra.mxu0 0
          %1591 = vmatpush.bf16.xpose.msra.mxu0 0
          %1592 = vmatpush.bf16.xpose.msra.mxu0 0
          %1593 = vmatpush.bf16.xpose.msra.mxu0 0
          %1594 = vmatpush.bf16.xpose.msra.mxu0 0
          %1595 = vmatpush.bf16.xpose.msra.mxu0 0
          %1596 = vmatpush.bf16.xpose.msra.mxu0 0
          %1597 = vmatpush.bf16.xpose.msra.mxu0 %v1588
          %1598 = vmatmul.bf16.gmra.mxu0 %v1585
          %v1599 = vpop.f32.mrf.mxu0
          %v1600 = vadd.f32 0.0, %v1599
          %v1601 = vpop.f32.mrf.mxu0
          %1602 = vdwg.mxu0
          %v1603 = vsel %vm902, %v1600, -inf
          %1604 = vmax.xlane.f32.xlu0 %v1603
          %v1605 = vpop.xlane.xlu0 %1604
          %v1606 = vsub.f32 %v1600, %v1605
          %v1607 = vmul.f32 %v1606, 1.442695
          %v1608 = vpow.pop %v1607
          %v1609 = vsel %vm902, %v1608, 0.0
          %1610 = vadd.xlane.f32.xlu0 %v1609
          %v1611 = vpop.xlane.xlu0 %1610
          %v1612 = vmul.f32 %v1611, 8.0
          %v1613 = vrcp.pop %v1612
          %v1614 = vmul.f32 %v1608, %v1613
          %v1615 = vpack.c.bf16 %v1614, %v1614
          %v1616 = vpack.c.bf16 %v1579, %v1579
          %v1618 = vsel %vm902, %v1615, 0
          %v1621 = vsel %vm920, %v1616, 0
          %1623 = vmatpush.bf16.msra.mxu0 0
          %1624 = vmatpush.bf16.msra.mxu0 0
          %1625 = vmatpush.bf16.msra.mxu0 0
          %1626 = vmatpush.bf16.msra.mxu0 0
          %1627 = vmatpush.bf16.msra.mxu0 0
          %1628 = vmatpush.bf16.msra.mxu0 0
          %1629 = vmatpush.bf16.msra.mxu0 0
          %1630 = vmatpush.bf16.msra.mxu0 %v1621
          %1631 = vmatmul.bf16.gmra.mxu0 %v1618
          %v1632 = vpop.f32.mrf.mxu0
          %v1633 = vadd.f32 0.0, %v1632
          %v1634 = vpop.f32.mrf.mxu0
          %1635 = vdwg.mxu0
          %v1636 = vpack.c.bf16 %v1633, %v1633
          %s1637 = scalar_lea.vmem %s9, 24
          %v1638 = vld [vmem:[%s1637] sm:$0xf]
          %v1639 = vld [vmem:[%s1637 + $0x4] sm:$0xf]
          %v1642 = vunpack.c.l.b16 %v1638
          %v1643 = vunpack.c.l.b16 %v1639
          %v1644 = vpack.c.b16 %v1643, %v1642
          %v1647 = vsel %vm882, %v1636, 0
          %1649 = vmatpush.bf16.msra.mxu0 0
          %1650 = vmatpush.bf16.msra.mxu0 0
          %1651 = vmatpush.bf16.msra.mxu0 0
          %1652 = vmatpush.bf16.msra.mxu0 0
          %1653 = vmatpush.bf16.msra.mxu0 0
          %1654 = vmatpush.bf16.msra.mxu0 0
          %1655 = vmatpush.bf16.msra.mxu0 0
          %1656 = vmatpush.bf16.msra.mxu0 %v1644
          %1657 = vmatmul.bf16.gmra.mxu0 %v1647
          %v1658 = vpop.f32.mrf.mxu0
          %v1659 = vadd.f32 0.0, %v1658
          %v1660 = vpop.f32.mrf.mxu0
          %1661 = vdwg.mxu0
          %v1662 = vadd.f32 %v1428, %v1659
          %v1663 = vadd.f32 %v688, %v1662
          %v1664 = vld [vmem:[%s10] sm:$0x1]
          %v1666 = vperm.slane %v1664, 0
          %v1668 = vadd.f32 %v1663, %v1666
          %1669 = vst.msk [vmem:[#allocation2] sm:$0xff] %vm691, %v1668
          %v1670 = vld [vmem:[%s11] sm:$0x1]
          %v1671 = vld [vmem:[%s12] sm:$0x1]
          %v1672 = vsel %vm691, %v1668, 0.0
          %1673 = vadd.xlane.f32.xlu0 %v1672
          %v1674 = vpop.xlane.xlu0 %1673
          %v1675 = vmul.f32 %v1674, %v701
          %v1676 = vsub.f32 %v1668, %v1675
          %v1677 = vmul.f32 %v1676, %v1676
          %v1678 = vsel %vm691, %v1677, 0.0
          %1679 = vadd.xlane.f32.xlu0 %v1678
          %v1680 = vpop.xlane.xlu0 %1679
          %v1681 = vmul.f32 %v1680, %v701
          %v1682 = vadd.f32 %v1681, 1e-05
          %v1683 = vrsqrt.pop %v1682
          %v1684 = vmul.f32 %v1683, %v1682
          %v1685 = vmul.f32 %v1684, %v1683
          %v1686 = vmul.f32 0.5, %v1685
          %v1687 = vsub.f32 1.5, %v1686
          %v1688 = vmul.f32 %v1683, %v1687
          %vm1689 = vweird.f32 %v1682
          %vm1690 = vweird.f32 %v1683
          %vm1691 = vmor %vm1689, %vm1690
          %v1692 = vsel %vm1691, %v1683, %v1688
          %v1693 = vmul.f32 %v1676, %v1692
          %v1695 = vperm.slane %v1670, 0
          %v1697 = vmul.f32 %v1693, %v1695
          %v1699 = vperm.slane %v1671, 0
          %v1701 = vadd.f32 %v1697, %v1699
          %v1702 = vpack.c.bf16 %v1701, %v1701
          %vm1703 = vcmask 519168
          %1704 = vst.msk [vmem:[#allocation3] sm:$0xf] %vm1703, %v1702
          %1705 = vst.msk [vmem:[#allocation4] sm:$0xff] %vm691, 0.0
        $region133: #{tpu_custom_call.1} parent=124 // pred_fallthru
          _
        %v1706 = vld [vmem:[#allocation3] sm:$0xf]
        %v1707 = vld [vmem:[%s609] sm:$0xf]
        %v1708 = vld [vmem:[%s609 + $0x4] sm:$0xf]
        %v1709 = vld [vmem:[%s609 + $0x8] sm:$0xf]
        %v1710 = vld [vmem:[%s609 + $0xc] sm:$0xf]
        %v1711 = vld [vmem:[%s609 + $0x10] sm:$0xf]
        %v1712 = vld [vmem:[%s609 + $0x14] sm:$0xf]
        %v1713 = vld [vmem:[%s609 + $0x18] sm:$0xf]
        %v1714 = vld [vmem:[%s609 + $0x1c] sm:$0xf]
        %v1715 = vld [vmem:[%s676] sm:$0x1]
        %v1717 = vperm.slane %v1715, 0
        %v1727 = vunpack.c.l.b16 %v1707
        %v1728 = vunpack.c.l.b16 %v1708
        %v1729 = vunpack.c.l.b16 %v1709
        %v1730 = vunpack.c.l.b16 %v1710
        %v1731 = vunpack.c.l.b16 %v1711
        %v1732 = vunpack.c.l.b16 %v1712
        %v1733 = vunpack.c.l.b16 %v1713
        %v1734 = vunpack.c.l.b16 %v1714
        %v1735 = vpack.c.b16 %v1728, %v1727
        %v1736 = vpack.c.b16 %v1730, %v1729
        %v1737 = vpack.c.b16 %v1732, %v1731
        %v1738 = vpack.c.b16 %v1734, %v1733
        %vm1743 = vcmask 523264
        %v1745 = vsel %vm1743, %v1706, 0
        %1747 = vmatpush.bf16.msra.mxu0 0
        %1748 = vmatpush.bf16.msra.mxu0 0
        %1749 = vmatpush.bf16.msra.mxu0 0
        %1750 = vmatpush.bf16.msra.mxu0 0
        %1751 = vmatpush.bf16.msra.mxu0 %v1738
        %1752 = vmatpush.bf16.msra.mxu0 %v1737
        %1753 = vmatpush.bf16.msra.mxu0 %v1736
        %1754 = vmatpush.bf16.msra.mxu0 %v1735
        %1755 = vmatmul.bf16.gmra.mxu0 %v1745
        %v1756 = vpop.f32.mrf.mxu0
        %v1757 = vadd.f32 %v1717, %v1756
        %v1758 = vpop.f32.mrf.mxu0
        %1759 = vdwg.mxu0
        %v1760 = vmul.f32 %v1757, 0.5
        %v1761 = vmul.f32 %v1757, 0.70710677
        %v1762 = vmul.f32 %v1761, %v1761
        %v1763 = vmin.f32 16.0, %v1762
        %v1764 = vmul.f32 %v1763, 2.1237322e-06
        %v1765 = vadd.f32 %v1764, 0.00028619796
        %v1766 = vmul.f32 %v1763, %v1765
        %v1767 = vadd.f32 %v1766, 0.0036580483
        %v1768 = vmul.f32 %v1763, %v1767
        %v1769 = vadd.f32 %v1768, 0.05243302
        %v1770 = vmul.f32 %v1763, %v1769
        %v1771 = vadd.f32 %v1770, 0.18741608
        %v1772 = vmul.f32 %v1763, %v1771
        %v1773 = vadd.f32 %v1772, 1.1283791
        %v1774 = vmul.f32 %v1761, %v1773
        %v1775 = vmul.f32 %v1763, 3.8918573e-05
        %v1776 = vadd.f32 %v1775, 0.001143296
        %v1777 = vmul.f32 %v1763, %v1776
        %v1778 = vadd.f32 %v1777, 0.014752088
        %v1779 = vmul.f32 %v1763, %v1778
        %v1780 = vadd.f32 %v1779, 0.112945676
        %v1781 = vmul.f32 %v1763, %v1780
        %v1782 = vadd.f32 %v1781, 0.4994258
        %v1783 = vmul.f32 %v1763, %v1782
        %v1784 = vadd.f32 %v1783, 1.0
        %v1785 = vrcp.pop %v1784
        %v1786 = vmul.f32 %v1784, %v1785
        %v1787 = vsub.f32 1.0, %v1786
        %v1788 = vmul.f32 %v1785, %v1787
        %v1789 = vadd.f32 %v1785, %v1788
        %vm1790 = vweird.f32 %v1784
        %vm1791 = vweird.f32 %v1785
        %vm1792 = vmor %vm1790, %vm1791
        %v1793 = vsel %vm1792, %v1785, %v1789
        %v1794 = vand.u32 2147483647, %v1784
        %vm1795 = vcmp.eq.f32.partialorder %v1794, 8.507059e+37
        %v1796 = vand.u32 %v1784, 2147483648
        %v1797 = vor.u32 1.1754944e-38, %v1796
        %v1798 = vsel %vm1795, %v1797, %v1793
        %v1799 = vmul.f32 %v1774, %v1798
        %v1800 = vmin.f32 %v1799, 1.0
        %v1801 = vmax.f32 %v1800, -1.0
        %v1802 = vadd.f32 %v1801, 1.0
        %v1803 = vmul.f32 %v1760, %v1802
        %v1804 = vld [vmem:[#allocation4] sm:$0xff]
        %v1805 = vpack.c.bf16 %v1803, %v1803
        %v1806 = vld [vmem:[%s681] sm:$0xf]
        %v1807 = vld [vmem:[%s681 + $0x4] sm:$0xf]
        %v1808 = vld [vmem:[%s681 + $0x8] sm:$0xf]
        %v1809 = vld [vmem:[%s681 + $0xc] sm:$0xf]
        %v1810 = vld [vmem:[%s681 + $0x10] sm:$0xf]
        %v1811 = vld [vmem:[%s681 + $0x14] sm:$0xf]
        %v1812 = vld [vmem:[%s681 + $0x18] sm:$0xf]
        %v1813 = vld [vmem:[%s681 + $0x1c] sm:$0xf]
        %v1814 = vld [vmem:[%s681 + $0x20] sm:$0xf]
        %v1815 = vld [vmem:[%s681 + $0x24] sm:$0xf]
        %v1816 = vld [vmem:[%s681 + $0x28] sm:$0xf]
        %v1817 = vld [vmem:[%s681 + $0x2c] sm:$0xf]
        %v1818 = vld [vmem:[%s681 + $0x30] sm:$0xf]
        %v1819 = vld [vmem:[%s681 + $0x34] sm:$0xf]
        %v1820 = vld [vmem:[%s681 + $0x38] sm:$0xf]
        %v1821 = vld [vmem:[%s681 + $0x3c] sm:$0xf]
        %v1838 = vunpack.c.l.b16 %v1806
        %v1839 = vunpack.c.l.b16 %v1807
        %v1840 = vunpack.c.l.b16 %v1808
        %v1841 = vunpack.c.l.b16 %v1809
        %v1842 = vunpack.c.l.b16 %v1810
        %v1843 = vunpack.c.l.b16 %v1811
        %v1844 = vunpack.c.l.b16 %v1812
        %v1845 = vunpack.c.l.b16 %v1813
        %v1846 = vunpack.c.l.b16 %v1814
        %v1847 = vunpack.c.l.b16 %v1815
        %v1848 = vunpack.c.l.b16 %v1816
        %v1849 = vunpack.c.l.b16 %v1817
        %v1850 = vunpack.c.l.b16 %v1818
        %v1851 = vunpack.c.l.b16 %v1819
        %v1852 = vunpack.c.l.b16 %v1820
        %v1853 = vunpack.c.l.b16 %v1821
        %v1854 = vpack.c.b16 %v1839, %v1838
        %v1855 = vpack.c.b16 %v1841, %v1840
        %v1856 = vpack.c.b16 %v1843, %v1842
        %v1857 = vpack.c.b16 %v1845, %v1844
        %v1858 = vpack.c.b16 %v1847, %v1846
        %v1859 = vpack.c.b16 %v1849, %v1848
        %v1860 = vpack.c.b16 %v1851, %v1850
        %v1861 = vpack.c.b16 %v1853, %v1852
        %1870 = vmatpush.bf16.msra.mxu0 %v1861
        %1871 = vmatpush.bf16.msra.mxu0 %v1860
        %1872 = vmatpush.bf16.msra.mxu0 %v1859
        %1873 = vmatpush.bf16.msra.mxu0 %v1858
        %1874 = vmatpush.bf16.msra.mxu0 %v1857
        %1875 = vmatpush.bf16.msra.mxu0 %v1856
        %1876 = vmatpush.bf16.msra.mxu0 %v1855
        %1877 = vmatpush.bf16.msra.mxu0 %v1854
        %1878 = vmatmul.bf16.gmra.mxu0 %v1805
        %v1879 = vpop.f32.mrf.mxu0
        %v1880 = vadd.f32 0.0, %v1879
        %v1881 = vpop.f32.mrf.mxu0
        %1882 = vdwg.mxu0
        %v1883 = vadd.f32 %v1804, %v1880
        %1884 = vst.msk [vmem:[#allocation4] sm:$0xff] %vm1743, %v1883
        %p1885 = scmp.eq.s32.totalorder %s36, 1
        // Predicated region
        $region134: #{tpu_custom_call.1} parent=124 // pred_check
          %p1886 = pneg %p1885
        $region135: #{tpu_custom_call.1} parent=124 // pred_check_branch
          %1888 = sbr.rel (%p1886) target = $region137
        $region136: #{tpu_custom_call.1} parent=124 // pred_region
          %v1889 = vld [vmem:[#allocation2] sm:$0xff]
          %v1890 = vld [vmem:[#allocation4] sm:$0xff]
          %v1891 = vadd.f32 %v1889, %v1890
          %v1892 = vld [vmem:[%s16] sm:$0x1]
          %v1894 = vperm.slane %v1892, 0
          %v1896 = vadd.f32 %v1891, %v1894
          %1897 = vst.msk [vmem:[%s669] sm:$0xff] %vm1743, %v1896
        $region137: #{tpu_custom_call.1} parent=124 // pred_fallthru
          _
        %s1898 = sand.u32 %s428, 1
        %s1899 = scalar_lea.sflag [#allocation7], %s1898
        %s1900 = sand.u32 %s428, 1
        %s1901 = smul.addr %s1900, 8
        %s1902 = scalar_lea.vmem [#allocation6], %s1901
        // Predicated region
        $region138: #{tpu_custom_call.1} parent=124 // pred_check
          %p1903 = pneg %p438
        $region139: #{tpu_custom_call.1} parent=124 // pred_check_branch
          %1905 = sbr.rel (%p1903) target = $region141
        $region140: #{tpu_custom_call.1} parent=124 // pred_region
          %1907 = vsyncadd %s1899, 0
          %s1908 = smul.addr %s35, 8
          %s1909 = scalar_lea.hbm %s17, %s1908
          %s1911 = sshll.u32 %s1902, 4
          %s1912 = int_to_ptr.vmem [resolvable:$true] %s1911
          %s1913 = sshll.u32 %s1909, 4
          %s1914 = int_to_ptr.hbm [resolvable:$true] %s1913
          %1916 = dma.vmem_to_hbm [thread:$0]  %s1912, 128, %s1914, %s1899
        $region141: #{tpu_custom_call.1} parent=124 // pred_fallthru
          _
      $region125: #{tpu_custom_call.1} parent=5 // pred_fallthru
        _
      %p1917 = scmp.le.s32.totalorder 2, %s26
      // Predicated region
      $region142: #{tpu_custom_call.1} parent=5 // pred_check
        %p1918 = pneg %p1917
      $region143: #{tpu_custom_call.1} parent=5 // pred_check_branch
        %1920 = sbr.rel (%p1918) target = $region145
      $region144: #{tpu_custom_call.1} parent=5 // pred_region
        %s1921 = ssub.s32 %s26, 2
        // Predicated region
        $region146: #{tpu_custom_call.1} parent=144 // pred_check
          %p1922 = pneg %p444
        $region147: #{tpu_custom_call.1} parent=144 // pred_check_branch
          %1924 = sbr.rel (%p1922) target = $region149
        $region148: #{tpu_custom_call.1} parent=144 // pred_region
          %s1925 = sand.u32 %s429, 1
          %s1926 = scalar_lea.sflag [#allocation7], %s1925
          %s1927 = sand.u32 %s429, 1
          %s1928 = smul.addr %s1927, 8
          %s1929 = scalar_lea.vmem [#allocation6], %s1928
          %1931 = dma.done %s1926, 128
        $region149: #{tpu_custom_call.1} parent=144 // pred_fallthru
          _
      $region145: #{tpu_custom_call.1} parent=5 // pred_fallthru
        _
    $region6: #{tpu_custom_call.1} parent=1 // loop_footer
      %s30 = sadd.s32 1, %s26
    $region7: #{tpu_custom_call.1} parent=1 // loop_footer_branch
      %25 = sbr.rel target = $region3
    $region8: #{tpu_custom_call.1} parent=1 // loop_exit
      _
    %1932 = vsyncpa [#allocation7], 1
    %s1933 = scalar_lea.sflag [#allocation7], 1
    %1934 = vsyncpa %s1933, 1

</llo_original>
